<compile_context>
chip_gen: v5e
topology: v5e:2x2
jax: 0.10.0
libtpu: 0.0.40
codegen_flags: <defaults>
</compile_context>

<pallas_src>
import functools
import math

import numpy as np
import jax
import jax.numpy as jnp
from jax import lax
from jax.experimental import pallas as pl
from jax.experimental.pallas import tpu as pltpu


def _downconv_kernel(x_ref, w1_ref, b1_ref, w2_ref, b2_ref, mask_ref,
                     o1_ref, o2_ref, ext_ref, rhs1_ref, rhs2_ref,
                     *, H, W, G):
    """Fused DownConv forward for one block of NB batch elements.

    x_ref    : (NB, Cin, Lext) zero-extended padded-flat input
               lane (G + ph*(W+2) + pw) holds x[ph-1, pw-1]; zeros elsewhere.
    w1_ref   : (Cout, 9*Cin)   conv1 weights, column (kh*3+kw)*Cin + ci
    w2_ref   : (Cout, 9*Cout)  conv2 weights, column (kh*3+kw)*Cout + co
    b*_ref   : (Cout, 1)
    mask_ref : (1, Lp)         1.0 at interior (real-pixel) lanes, 0.0 at pad lanes
    o1_ref   : (NB, Cout, Lp)  before_pool in padded-flat layout (cropped in wrapper)
    o2_ref   : (NB, Cout, Lp)  2x2 pairwise-max slab (stride-2 downselect in wrapper)
    ext_ref  : (Cout, Lext)    f32 scratch: zero-extended activation slab
    rhs1_ref : (9*Cin, Lp)     im2col RHS for conv1 (conv_dtype)
    rhs2_ref : (9*Cout, Lp)    im2col RHS for conv2 (conv_dtype)
    """
    Wp2 = W + 2
    Lp = (H + 2) * Wp2
    inv_hw = 1.0 / float(H * W)
    eps = 1e-5
    slope = 0.2
    NB = x_ref.shape[0]
    Cin = rhs1_ref.shape[0] // 9
    Cout = ext_ref.shape[0]

    mask = mask_ref[...]                              # (1, Lp)

    def off(t):                                       # lane offset of tap t (python int)
        kh, kw = t // 3, t % 3
        return G + (kh - 1) * Wp2 + (kw - 1)

    def inorm_lrelu(y, mask_output):
        # InstanceNorm2d (biased var, eps=1e-5, no affine) + LeakyReLU(0.2) over the
        # H*W interior lanes.  Two-pass (centered) variance for robustness; the mask
        # multiply is hoisted and reused.
        ym = y * mask
        mean = jnp.sum(ym, axis=1, keepdims=True) * inv_hw
        d = y - mean
        dm = d * mask
        var = jnp.sum(dm * dm, axis=1, keepdims=True) * inv_hw
        yn = d * lax.rsqrt(var + eps)
        out = jnp.maximum(yn, slope * yn)
        return out * mask if mask_output else out

    # Zero only the two guard bands, once per grid step (interior is always fully
    # rewritten before being read; guards are never written inside the sample loop).
    ext_ref[:, :G] = jnp.zeros((Cout, G), ext_ref.dtype)
    ext_ref[:, G + Lp:] = jnp.zeros((Cout, G), ext_ref.dtype)

    for s in range(NB):                               # static unroll over the batch block
        # ---- conv1: stack 9 lane-shifted windows -> one (Cout,9Cin)x(9Cin,Lp) matmul
        for t in range(9):
            rhs1_ref[t * Cin:(t + 1) * Cin, :] = (
                x_ref[s, :, off(t):off(t) + Lp].astype(rhs1_ref.dtype))
        h1 = jnp.dot(w1_ref[...], rhs1_ref[...],
                     preferred_element_type=jnp.float32) + b1_ref[...]
        a1 = inorm_lrelu(h1, mask_output=True)        # (Cout, Lp), border lanes = 0

        # ---- stage a1 into the guarded slab, build conv2 im2col RHS, one matmul ----
        ext_ref[:, G:G + Lp] = a1
        for t in range(9):
            rhs2_ref[t * Cout:(t + 1) * Cout, :] = (
                ext_ref[:, off(t):off(t) + Lp].astype(rhs2_ref.dtype))
        h2 = jnp.dot(w2_ref[...], rhs2_ref[...],
                     preferred_element_type=jnp.float32) + b2_ref[...]
        a2 = inorm_lrelu(h2, mask_output=False)       # border never read downstream

        # ---- before_pool: padded-flat slab, cropped to (H, W) in the wrapper -------
        o1_ref[s] = a2

        # ---- MaxPool2d(2,2): pairwise max of 4 shifted windows (VPU only, no MXU) --
        ext_ref[:, G:G + Lp] = a2
        vm = jnp.maximum(
            jnp.maximum(a2, ext_ref[:, G + 1:G + 1 + Lp]),
            jnp.maximum(ext_ref[:, G + Wp2:G + Wp2 + Lp],
                        ext_ref[:, G + Wp2 + 1:G + Wp2 + 1 + Lp]))
        o2_ref[s] = vm


def downconv_pallas(x, params, pooling=True, conv_dtype=jnp.float32):
    """DownConv forward. x: (N, Cin, H, W) NCHW. Returns (pooled, before_pool).

    conv_dtype: matmul-operand dtype.  jnp.bfloat16 is recommended on v6e/v7x for
    MXU throughput (f32 accumulation + f32 norm math are kept); default f32 holds
    the 1e-3 validation tolerance.
    """
    w1, b1, w2, b2 = params
    N, Cin, H, W = x.shape
    Cout = w1.shape[0]
    if pooling:
        assert H % 2 == 0 and W % 2 == 0, "MaxPool2d(2,2) path assumes even H, W"
    Wp2 = W + 2
    Lp = (H + 2) * Wp2
    G = -(-(W + 3) // 128) * 128               # lane-tile aligned zero guard, >= W+3
    Lext = Lp + 2 * G

    # Batch block per grid step (amortizes fixed per-step overhead); always divides N.
    nb = math.gcd(N, 8)

    # Only XLA glue on the input: one small pad of the raw input + free reshapes.
    xpf = jnp.pad(x, ((0, 0), (0, 0), (1, 1), (1, 1))).reshape(N, Cin, Lp)
    xext = jnp.pad(xpf, ((0, 0), (0, 0), (G, G)))                  # (N, Cin, Lext)

    # Stacked im2col weights: column (kh*3+kw)*C + c  <->  RHS row t*C + c.
    w1s = jnp.transpose(w1, (0, 2, 3, 1)).reshape(Cout, 9 * Cin).astype(conv_dtype)
    w2s = jnp.transpose(w2, (0, 2, 3, 1)).reshape(Cout, 9 * Cout).astype(conv_dtype)
    b1c = b1.reshape(Cout, 1).astype(jnp.float32)
    b2c = b2.reshape(Cout, 1).astype(jnp.float32)

    # Interior-lane mask, built with numpy at trace time (no vector div/mod in-kernel).
    qs = np.arange(Lp)
    ph, pw = qs // Wp2, qs % Wp2
    mask = ((ph >= 1) & (ph <= H) & (pw >= 1) & (pw <= W)).astype(np.float32)[None, :]

    kernel = functools.partial(_downconv_kernel, H=H, W=W, G=G)

    bp_slab, vm_slab = pl.pallas_call(
        kernel,
        out_shape=(jax.ShapeDtypeStruct((N, Cout, Lp), jnp.float32),
                   jax.ShapeDtypeStruct((N, Cout, Lp), jnp.float32)),
        grid_spec=pltpu.PrefetchScalarGridSpec(
            num_scalar_prefetch=0,
            grid=(N // nb,),
            in_specs=[
                pl.BlockSpec((nb, Cin, Lext), lambda n: (n, 0, 0)),
                pl.BlockSpec((Cout, 9 * Cin), lambda n: (0, 0)),
                pl.BlockSpec((Cout, 1), lambda n: (0, 0)),
                pl.BlockSpec((Cout, 9 * Cout), lambda n: (0, 0)),
                pl.BlockSpec((Cout, 1), lambda n: (0, 0)),
                pl.BlockSpec((1, Lp), lambda n: (0, 0)),
            ],
            out_specs=(
                pl.BlockSpec((nb, Cout, Lp), lambda n: (n, 0, 0)),
                pl.BlockSpec((nb, Cout, Lp), lambda n: (n, 0, 0)),
            ),
            scratch_shapes=[
                pltpu.VMEM((Cout, Lext), jnp.float32),      # zero-extended slab (f32)
                pltpu.VMEM((9 * Cin, Lp), conv_dtype),      # conv1 im2col RHS
                pltpu.VMEM((9 * Cout, Lp), conv_dtype),     # conv2 im2col RHS
            ],
        ),
        compiler_params=pltpu.CompilerParams(
            dimension_semantics=("parallel",)),   # batch blocks independent -> 2 TCs on v7x
    )(xext, w1s, b1c, w2s, b2c, jnp.asarray(mask))

    # Wrapper-side layout plumbing only (tiny strided slices, no compute hoisted here).
    bp4 = bp_slab.reshape(N, Cout, H + 2, Wp2)
    before_pool = bp4[:, :, 1:H + 1, 1:W + 1]
    if not pooling:
        return before_pool, before_pool
    vm4 = vm_slab.reshape(N, Cout, H + 2, Wp2)
    pooled = vm4[:, :, 1:H + 1:2, 1:W + 1:2]
    return pooled, before_pool


# ---------------------------------------------------------------------------
# Pure-JAX reference (NCHW) for validation
# ---------------------------------------------------------------------------
def downconv_ref(x, params):
    w1, b1, w2, b2 = params

    def block(x, w, b):
        y = lax.conv_general_dilated(x, w, (1, 1), [(1, 1), (1, 1)],
                                     dimension_numbers=('NCHW', 'OIHW', 'NCHW'),
                                     precision=lax.Precision.HIGHEST)
        y = y + b[None, :, None, None]
        m = y.mean(axis=(2, 3), keepdims=True)
        v = y.var(axis=(2, 3), keepdims=True)        # biased var (InstanceNorm2d)
        y = (y - m) / jnp.sqrt(v + 1e-5)
        return jnp.where(y > 0, y, 0.2 * y)

    bp = block(block(x, w1, b1), w2, b2)
    N, C, H, W = bp.shape
    pooled = bp.reshape(N, C, H // 2, 2, W // 2, 2).max(axis=(3, 5))
    return pooled, bp


if __name__ == "__main__":
    N, Cin, Cout, H, W = 2, 4, 8, 16, 16

    key = jax.random.PRNGKey(0)
    k = jax.random.split(key, 5)
    w1 = 0.1 * jax.random.normal(k[0], (Cout, Cin, 3, 3), jnp.float32)   # conv1 (OIHW)
    b1 = 0.05 * jax.random.normal(k[1], (Cout,), jnp.float32)
    w2 = 0.1 * jax.random.normal(k[2], (Cout, Cout, 3, 3), jnp.float32)  # conv2 (OIHW)
    b2 = 0.05 * jax.random.normal(k[3], (Cout,), jnp.float32)
    params = (w1, b1, w2, b2)

    x = jax.random.normal(k[4], (N, Cin, H, W), jnp.float32)

    fwd = jax.jit(downconv_pallas)
    pooled, before_pool = jax.block_until_ready(fwd(x, params))
    pooled_r, before_pool_r = jax.block_until_ready(downconv_ref(x, params))

    assert pooled.shape == (N, Cout, H // 2, W // 2), pooled.shape
    assert before_pool.shape == (N, Cout, H, W), before_pool.shape
    assert jnp.allclose(before_pool, before_pool_r, rtol=1e-3, atol=1e-3), \
        float(jnp.max(jnp.abs(before_pool - before_pool_r)))
    assert jnp.allclose(pooled, pooled_r, rtol=1e-3, atol=1e-3), \
        float(jnp.max(jnp.abs(pooled - pooled_r)))
    print("KERNEL_OK")
</pallas_src>

<mosaic_0001>
module attributes {stable_mosaic.version = 11 : i64} {
  func.func @_downconv_kernel(%arg0: i32, %arg1: memref<2x4x580xf32, #tpu.memory_space<vmem>>, %arg2: memref<8x36xf32, #tpu.memory_space<vmem>>, %arg3: memref<8x1xf32, #tpu.memory_space<vmem>>, %arg4: memref<8x72xf32, #tpu.memory_space<vmem>>, %arg5: memref<8x1xf32, #tpu.memory_space<vmem>>, %arg6: memref<1x324xf32, #tpu.memory_space<vmem>>, %arg7: memref<2x8x324xf32, #tpu.memory_space<vmem>>, %arg8: memref<2x8x324xf32, #tpu.memory_space<vmem>>, %arg9: memref<8x580xf32, #tpu.memory_space<vmem>>, %arg10: memref<36x324xf32, #tpu.memory_space<vmem>>, %arg11: memref<72x324xf32, #tpu.memory_space<vmem>>) attributes {dimension_semantics = [#tpu.dimension_semantics<parallel>], iteration_bounds = array<i64: 1>, scalar_prefetch = 0 : i64, scratch_operands = 3 : i64, tpu.core_type = #tpu.core_type<tc>, window_params = [{transform_indices = @transform_0, window_bounds = array<i64: 2, 4, 580>}, {pipeline_mode = #tpu.pipeline_mode<synchronous>, transform_indices = @transform_1, window_bounds = array<i64: 8, 36>}, {pipeline_mode = #tpu.pipeline_mode<synchronous>, transform_indices = @transform_2, window_bounds = array<i64: 8, 1>}, {pipeline_mode = #tpu.pipeline_mode<synchronous>, transform_indices = @transform_3, window_bounds = array<i64: 8, 72>}, {pipeline_mode = #tpu.pipeline_mode<synchronous>, transform_indices = @transform_4, window_bounds = array<i64: 8, 1>}, {pipeline_mode = #tpu.pipeline_mode<synchronous>, transform_indices = @transform_5, window_bounds = array<i64: 1, 324>}, {transform_indices = @transform_6, window_bounds = array<i64: 2, 8, 324>}, {transform_indices = @transform_7, window_bounds = array<i64: 2, 8, 324>}]} {
    %c0 = arith.constant 0 : index
    %c0_0 = arith.constant 0 : index
    %0 = vector.load %arg6[%c0, %c0_0] : memref<1x324xf32, #tpu.memory_space<vmem>>, vector<1x324xf32>
    %cst = arith.constant 0.000000e+00 : f32
    %1 = vector.broadcast %cst : f32 to vector<8x128xf32>
    %c0_1 = arith.constant 0 : index
    %c0_2 = arith.constant 0 : index
    %2 = vector.load %arg9[%c0_1, %c0_2] : memref<8x580xf32, #tpu.memory_space<vmem>>, vector<8x128xf32>
    tpu.vector_store %arg9[%c0_1, %c0_2], %1 {strides = array<i32>} : memref<8x580xf32, #tpu.memory_space<vmem>>, vector<8x128xf32>,
    %cst_3 = arith.constant 0.000000e+00 : f32
    %3 = vector.broadcast %cst_3 : f32 to vector<8x128xf32>
    %c0_4 = arith.constant 0 : index
    %c452 = arith.constant 452 : index
    %4 = vector.load %arg9[%c0_4, %c452] : memref<8x580xf32, #tpu.memory_space<vmem>>, vector<8x128xf32>
    tpu.vector_store %arg9[%c0_4, %c452], %3 {strides = array<i32>} : memref<8x580xf32, #tpu.memory_space<vmem>>, vector<8x128xf32>,
    %c0_5 = arith.constant 0 : index
    %c0_6 = arith.constant 0 : index
    %c109 = arith.constant 109 : index
    %5 = vector.load %arg1[%c0_5, %c0_6, %c109] : memref<2x4x580xf32, #tpu.memory_space<vmem>>, vector<1x4x324xf32>
    %6 = vector.shape_cast %5 : vector<1x4x324xf32> to vector<4x324xf32>
    %c0_7 = arith.constant 0 : index
    %c0_8 = arith.constant 0 : index
    %7 = vector.load %arg10[%c0_7, %c0_8] : memref<36x324xf32, #tpu.memory_space<vmem>>, vector<4x324xf32>
    tpu.vector_store %arg10[%c0_7, %c0_8], %6 {strides = array<i32>} : memref<36x324xf32, #tpu.memory_space<vmem>>, vector<4x324xf32>,
    %c0_9 = arith.constant 0 : index
    %c0_10 = arith.constant 0 : index
    %c110 = arith.constant 110 : index
    %8 = vector.load %arg1[%c0_9, %c0_10, %c110] : memref<2x4x580xf32, #tpu.memory_space<vmem>>, vector<1x4x324xf32>
    %9 = vector.shape_cast %8 : vector<1x4x324xf32> to vector<4x324xf32>
    %c4 = arith.constant 4 : index
    %c0_11 = arith.constant 0 : index
    %10 = vector.load %arg10[%c4, %c0_11] : memref<36x324xf32, #tpu.memory_space<vmem>>, vector<4x324xf32>
    tpu.vector_store %arg10[%c4, %c0_11], %9 {strides = array<i32>} : memref<36x324xf32, #tpu.memory_space<vmem>>, vector<4x324xf32>,
    %c0_12 = arith.constant 0 : index
    %c0_13 = arith.constant 0 : index
    %c111 = arith.constant 111 : index
    %11 = vector.load %arg1[%c0_12, %c0_13, %c111] : memref<2x4x580xf32, #tpu.memory_space<vmem>>, vector<1x4x324xf32>
    %12 = vector.shape_cast %11 : vector<1x4x324xf32> to vector<4x324xf32>
    %c8 = arith.constant 8 : index
    %c0_14 = arith.constant 0 : index
    %13 = vector.load %arg10[%c8, %c0_14] : memref<36x324xf32, #tpu.memory_space<vmem>>, vector<4x324xf32>
    tpu.vector_store %arg10[%c8, %c0_14], %12 {strides = array<i32>} : memref<36x324xf32, #tpu.memory_space<vmem>>, vector<4x324xf32>,
    %c0_15 = arith.constant 0 : index
    %c0_16 = arith.constant 0 : index
    %c127 = arith.constant 127 : index
    %14 = vector.load %arg1[%c0_15, %c0_16, %c127] : memref<2x4x580xf32, #tpu.memory_space<vmem>>, vector<1x4x324xf32>
    %15 = vector.shape_cast %14 : vector<1x4x324xf32> to vector<4x324xf32>
    %c12 = arith.constant 12 : index
    %c0_17 = arith.constant 0 : index
    %16 = vector.load %arg10[%c12, %c0_17] : memref<36x324xf32, #tpu.memory_space<vmem>>, vector<4x324xf32>
    tpu.vector_store %arg10[%c12, %c0_17], %15 {strides = array<i32>} : memref<36x324xf32, #tpu.memory_space<vmem>>, vector<4x324xf32>,
    %c0_18 = arith.constant 0 : index
    %c0_19 = arith.constant 0 : index
    %c128 = arith.constant 128 : index
    %17 = vector.load %arg1[%c0_18, %c0_19, %c128] : memref<2x4x580xf32, #tpu.memory_space<vmem>>, vector<1x4x324xf32>
    %18 = vector.shape_cast %17 : vector<1x4x324xf32> to vector<4x324xf32>
    %c16 = arith.constant 16 : index
    %c0_20 = arith.constant 0 : index
    %19 = vector.load %arg10[%c16, %c0_20] : memref<36x324xf32, #tpu.memory_space<vmem>>, vector<4x324xf32>
    tpu.vector_store %arg10[%c16, %c0_20], %18 {strides = array<i32>} : memref<36x324xf32, #tpu.memory_space<vmem>>, vector<4x324xf32>,
    %c0_21 = arith.constant 0 : index
    %c0_22 = arith.constant 0 : index
    %c129 = arith.constant 129 : index
    %20 = vector.load %arg1[%c0_21, %c0_22, %c129] : memref<2x4x580xf32, #tpu.memory_space<vmem>>, vector<1x4x324xf32>
    %21 = vector.shape_cast %20 : vector<1x4x324xf32> to vector<4x324xf32>
    %c20 = arith.constant 20 : index
    %c0_23 = arith.constant 0 : index
    %22 = vector.load %arg10[%c20, %c0_23] : memref<36x324xf32, #tpu.memory_space<vmem>>, vector<4x324xf32>
    tpu.vector_store %arg10[%c20, %c0_23], %21 {strides = array<i32>} : memref<36x324xf32, #tpu.memory_space<vmem>>, vector<4x324xf32>,
    %c0_24 = arith.constant 0 : index
    %c0_25 = arith.constant 0 : index
    %c145 = arith.constant 145 : index
    %23 = vector.load %arg1[%c0_24, %c0_25, %c145] : memref<2x4x580xf32, #tpu.memory_space<vmem>>, vector<1x4x324xf32>
    %24 = vector.shape_cast %23 : vector<1x4x324xf32> to vector<4x324xf32>
    %c24 = arith.constant 24 : index
    %c0_26 = arith.constant 0 : index
    %25 = vector.load %arg10[%c24, %c0_26] : memref<36x324xf32, #tpu.memory_space<vmem>>, vector<4x324xf32>
    tpu.vector_store %arg10[%c24, %c0_26], %24 {strides = array<i32>} : memref<36x324xf32, #tpu.memory_space<vmem>>, vector<4x324xf32>,
    %c0_27 = arith.constant 0 : index
    %c0_28 = arith.constant 0 : index
    %c146 = arith.constant 146 : index
    %26 = vector.load %arg1[%c0_27, %c0_28, %c146] : memref<2x4x580xf32, #tpu.memory_space<vmem>>, vector<1x4x324xf32>
    %27 = vector.shape_cast %26 : vector<1x4x324xf32> to vector<4x324xf32>
    %c28 = arith.constant 28 : index
    %c0_29 = arith.constant 0 : index
    %28 = vector.load %arg10[%c28, %c0_29] : memref<36x324xf32, #tpu.memory_space<vmem>>, vector<4x324xf32>
    tpu.vector_store %arg10[%c28, %c0_29], %27 {strides = array<i32>} : memref<36x324xf32, #tpu.memory_space<vmem>>, vector<4x324xf32>,
    %c0_30 = arith.constant 0 : index
    %c0_31 = arith.constant 0 : index
    %c147 = arith.constant 147 : index
    %29 = vector.load %arg1[%c0_30, %c0_31, %c147] : memref<2x4x580xf32, #tpu.memory_space<vmem>>, vector<1x4x324xf32>
    %30 = vector.shape_cast %29 : vector<1x4x324xf32> to vector<4x324xf32>
    %c32 = arith.constant 32 : index
    %c0_32 = arith.constant 0 : index
    %31 = vector.load %arg10[%c32, %c0_32] : memref<36x324xf32, #tpu.memory_space<vmem>>, vector<4x324xf32>
    tpu.vector_store %arg10[%c32, %c0_32], %30 {strides = array<i32>} : memref<36x324xf32, #tpu.memory_space<vmem>>, vector<4x324xf32>,
    %c0_33 = arith.constant 0 : index
    %c0_34 = arith.constant 0 : index
    %32 = vector.load %arg2[%c0_33, %c0_34] : memref<8x36xf32, #tpu.memory_space<vmem>>, vector<8x36xf32>
    %c0_35 = arith.constant 0 : index
    %c0_36 = arith.constant 0 : index
    %33 = vector.load %arg10[%c0_35, %c0_36] : memref<36x324xf32, #tpu.memory_space<vmem>>, vector<36x324xf32>
    %cst_37 = arith.constant dense<0.000000e+00> : vector<8x324xf32>
    %34 = tpu.matmul %32, %33, %cst_37 {dimension_numbers = #tpu.dot_dimension_numbers<[1], [0], [0], [1], [0, 0, 1, 1], [], []>} : vector<8x36xf32>, vector<36x324xf32>, vector<8x324xf32> -> vector<8x324xf32>
    %c0_38 = arith.constant 0 : index
    %c0_39 = arith.constant 0 : index
    %35 = vector.load %arg3[%c0_38, %c0_39] : memref<8x1xf32, #tpu.memory_space<vmem>>, vector<8x1xf32>
    %36 = vector.broadcast %35 : vector<8x1xf32> to vector<8x324xf32>
    %37 = arith.addf %34, %36 : vector<8x324xf32>
    %38 = vector.broadcast %0 : vector<1x324xf32> to vector<8x324xf32>
    %39 = arith.mulf %37, %38 : vector<8x324xf32>
    %cst_40 = arith.constant dense<0.000000e+00> : vector<8xf32>
    %40 = vector.multi_reduction <add>, %39, %cst_40 [1] : vector<8x324xf32> to vector<8xf32>
    %41 = vector.shape_cast %40 : vector<8xf32> to vector<8x1xf32>
    %cst_41 = arith.constant 3.906250e-03 : f32
    %42 = vector.broadcast %cst_41 : f32 to vector<8x1xf32>
    %43 = arith.mulf %41, %42 : vector<8x1xf32>
    %44 = vector.broadcast %43 : vector<8x1xf32> to vector<8x324xf32>
    %45 = arith.subf %37, %44 : vector<8x324xf32>
    %46 = vector.broadcast %0 : vector<1x324xf32> to vector<8x324xf32>
    %47 = arith.mulf %45, %46 : vector<8x324xf32>
    %48 = arith.mulf %47, %47 : vector<8x324xf32>
    %cst_42 = arith.constant dense<0.000000e+00> : vector<8xf32>
    %49 = vector.multi_reduction <add>, %48, %cst_42 [1] : vector<8x324xf32> to vector<8xf32>
    %50 = vector.shape_cast %49 : vector<8xf32> to vector<8x1xf32>
    %cst_43 = arith.constant 3.906250e-03 : f32
    %51 = vector.broadcast %cst_43 : f32 to vector<8x1xf32>
    %52 = arith.mulf %50, %51 : vector<8x1xf32>
    %cst_44 = arith.constant 9.99999974E-6 : f32
    %53 = vector.broadcast %cst_44 : f32 to vector<8x1xf32>
    %54 = arith.addf %52, %53 : vector<8x1xf32>
    %55 = math.rsqrt %54 : vector<8x1xf32>
    %56 = vector.broadcast %55 : vector<8x1xf32> to vector<8x324xf32>
    %57 = arith.mulf %45, %56 : vector<8x324xf32>
    %cst_45 = arith.constant 2.000000e-01 : f32
    %58 = vector.broadcast %cst_45 : f32 to vector<8x324xf32>
    %59 = arith.mulf %58, %57 : vector<8x324xf32>
    %60 = arith.maximumf %57, %59 : vector<8x324xf32>
    %61 = vector.broadcast %0 : vector<1x324xf32> to vector<8x324xf32>
    %62 = arith.mulf %60, %61 : vector<8x324xf32>
    %c0_46 = arith.constant 0 : index
    %c128_47 = arith.constant 128 : index
    %63 = vector.load %arg9[%c0_46, %c128_47] : memref<8x580xf32, #tpu.memory_space<vmem>>, vector<8x324xf32>
    tpu.vector_store %arg9[%c0_46, %c128_47], %62 {strides = array<i32>} : memref<8x580xf32, #tpu.memory_space<vmem>>, vector<8x324xf32>,
    %c0_48 = arith.constant 0 : index
    %c109_49 = arith.constant 109 : index
    %64 = vector.load %arg9[%c0_48, %c109_49] : memref<8x580xf32, #tpu.memory_space<vmem>>, vector<8x324xf32>
    %c0_50 = arith.constant 0 : index
    %c0_51 = arith.constant 0 : index
    %65 = vector.load %arg11[%c0_50, %c0_51] : memref<72x324xf32, #tpu.memory_space<vmem>>, vector<8x324xf32>
    tpu.vector_store %arg11[%c0_50, %c0_51], %64 {strides = array<i32>} : memref<72x324xf32, #tpu.memory_space<vmem>>, vector<8x324xf32>,
    %c0_52 = arith.constant 0 : index
    %c110_53 = arith.constant 110 : index
    %66 = vector.load %arg9[%c0_52, %c110_53] : memref<8x580xf32, #tpu.memory_space<vmem>>, vector<8x324xf32>
    %c8_54 = arith.constant 8 : index
    %c0_55 = arith.constant 0 : index
    %67 = vector.load %arg11[%c8_54, %c0_55] : memref<72x324xf32, #tpu.memory_space<vmem>>, vector<8x324xf32>
    tpu.vector_store %arg11[%c8_54, %c0_55], %66 {strides = array<i32>} : memref<72x324xf32, #tpu.memory_space<vmem>>, vector<8x324xf32>,
    %c0_56 = arith.constant 0 : index
    %c111_57 = arith.constant 111 : index
    %68 = vector.load %arg9[%c0_56, %c111_57] : memref<8x580xf32, #tpu.memory_space<vmem>>, vector<8x324xf32>
    %c16_58 = arith.constant 16 : index
    %c0_59 = arith.constant 0 : index
    %69 = vector.load %arg11[%c16_58, %c0_59] : memref<72x324xf32, #tpu.memory_space<vmem>>, vector<8x324xf32>
    tpu.vector_store %arg11[%c16_58, %c0_59], %68 {strides = array<i32>} : memref<72x324xf32, #tpu.memory_space<vmem>>, vector<8x324xf32>,
    %c0_60 = arith.constant 0 : index
    %c127_61 = arith.constant 127 : index
    %70 = vector.load %arg9[%c0_60, %c127_61] : memref<8x580xf32, #tpu.memory_space<vmem>>, vector<8x324xf32>
    %c24_62 = arith.constant 24 : index
    %c0_63 = arith.constant 0 : index
    %71 = vector.load %arg11[%c24_62, %c0_63] : memref<72x324xf32, #tpu.memory_space<vmem>>, vector<8x324xf32>
    tpu.vector_store %arg11[%c24_62, %c0_63], %70 {strides = array<i32>} : memref<72x324xf32, #tpu.memory_space<vmem>>, vector<8x324xf32>,
    %c0_64 = arith.constant 0 : index
    %c128_65 = arith.constant 128 : index
    %72 = vector.load %arg9[%c0_64, %c128_65] : memref<8x580xf32, #tpu.memory_space<vmem>>, vector<8x324xf32>
    %c32_66 = arith.constant 32 : index
    %c0_67 = arith.constant 0 : index
    %73 = vector.load %arg11[%c32_66, %c0_67] : memref<72x324xf32, #tpu.memory_space<vmem>>, vector<8x324xf32>
    tpu.vector_store %arg11[%c32_66, %c0_67], %72 {strides = array<i32>} : memref<72x324xf32, #tpu.memory_space<vmem>>, vector<8x324xf32>,
    %c0_68 = arith.constant 0 : index
    %c129_69 = arith.constant 129 : index
    %74 = vector.load %arg9[%c0_68, %c129_69] : memref<8x580xf32, #tpu.memory_space<vmem>>, vector<8x324xf32>
    %c40 = arith.constant 40 : index
    %c0_70 = arith.constant 0 : index
    %75 = vector.load %arg11[%c40, %c0_70] : memref<72x324xf32, #tpu.memory_space<vmem>>, vector<8x324xf32>
    tpu.vector_store %arg11[%c40, %c0_70], %74 {strides = array<i32>} : memref<72x324xf32, #tpu.memory_space<vmem>>, vector<8x324xf32>,
    %c0_71 = arith.constant 0 : index
    %c145_72 = arith.constant 145 : index
    %76 = vector.load %arg9[%c0_71, %c145_72] : memref<8x580xf32, #tpu.memory_space<vmem>>, vector<8x324xf32>
    %c48 = arith.constant 48 : index
    %c0_73 = arith.constant 0 : index
    %77 = vector.load %arg11[%c48, %c0_73] : memref<72x324xf32, #tpu.memory_space<vmem>>, vector<8x324xf32>
    tpu.vector_store %arg11[%c48, %c0_73], %76 {strides = array<i32>} : memref<72x324xf32, #tpu.memory_space<vmem>>, vector<8x324xf32>,
    %c0_74 = arith.constant 0 : index
    %c146_75 = arith.constant 146 : index
    %78 = vector.load %arg9[%c0_74, %c146_75] : memref<8x580xf32, #tpu.memory_space<vmem>>, vector<8x324xf32>
    %c56 = arith.constant 56 : index
    %c0_76 = arith.constant 0 : index
    %79 = vector.load %arg11[%c56, %c0_76] : memref<72x324xf32, #tpu.memory_space<vmem>>, vector<8x324xf32>
    tpu.vector_store %arg11[%c56, %c0_76], %78 {strides = array<i32>} : memref<72x324xf32, #tpu.memory_space<vmem>>, vector<8x324xf32>,
    %c0_77 = arith.constant 0 : index
    %c147_78 = arith.constant 147 : index
    %80 = vector.load %arg9[%c0_77, %c147_78] : memref<8x580xf32, #tpu.memory_space<vmem>>, vector<8x324xf32>
    %c64 = arith.constant 64 : index
    %c0_79 = arith.constant 0 : index
    %81 = vector.load %arg11[%c64, %c0_79] : memref<72x324xf32, #tpu.memory_space<vmem>>, vector<8x324xf32>
    tpu.vector_store %arg11[%c64, %c0_79], %80 {strides = array<i32>} : memref<72x324xf32, #tpu.memory_space<vmem>>, vector<8x324xf32>,
    %c0_80 = arith.constant 0 : index
    %c0_81 = arith.constant 0 : index
    %82 = vector.load %arg4[%c0_80, %c0_81] : memref<8x72xf32, #tpu.memory_space<vmem>>, vector<8x72xf32>
    %c0_82 = arith.constant 0 : index
    %c0_83 = arith.constant 0 : index
    %83 = vector.load %arg11[%c0_82, %c0_83] : memref<72x324xf32, #tpu.memory_space<vmem>>, vector<72x324xf32>
    %cst_84 = arith.constant dense<0.000000e+00> : vector<8x324xf32>
    %84 = tpu.matmul %82, %83, %cst_84 {dimension_numbers = #tpu.dot_dimension_numbers<[1], [0], [0], [1], [0, 0, 1, 1], [], []>} : vector<8x72xf32>, vector<72x324xf32>, vector<8x324xf32> -> vector<8x324xf32>
    %c0_85 = arith.constant 0 : index
    %c0_86 = arith.constant 0 : index
    %85 = vector.load %arg5[%c0_85, %c0_86] : memref<8x1xf32, #tpu.memory_space<vmem>>, vector<8x1xf32>
    %86 = vector.broadcast %85 : vector<8x1xf32> to vector<8x324xf32>
    %87 = arith.addf %84, %86 : vector<8x324xf32>
    %88 = vector.broadcast %0 : vector<1x324xf32> to vector<8x324xf32>
    %89 = arith.mulf %87, %88 : vector<8x324xf32>
    %cst_87 = arith.constant dense<0.000000e+00> : vector<8xf32>
    %90 = vector.multi_reduction <add>, %89, %cst_87 [1] : vector<8x324xf32> to vector<8xf32>
    %91 = vector.shape_cast %90 : vector<8xf32> to vector<8x1xf32>
    %cst_88 = arith.constant 3.906250e-03 : f32
    %92 = vector.broadcast %cst_88 : f32 to vector<8x1xf32>
    %93 = arith.mulf %91, %92 : vector<8x1xf32>
    %94 = vector.broadcast %93 : vector<8x1xf32> to vector<8x324xf32>
    %95 = arith.subf %87, %94 : vector<8x324xf32>
    %96 = vector.broadcast %0 : vector<1x324xf32> to vector<8x324xf32>
    %97 = arith.mulf %95, %96 : vector<8x324xf32>
    %98 = arith.mulf %97, %97 : vector<8x324xf32>
    %cst_89 = arith.constant dense<0.000000e+00> : vector<8xf32>
    %99 = vector.multi_reduction <add>, %98, %cst_89 [1] : vector<8x324xf32> to vector<8xf32>
    %100 = vector.shape_cast %99 : vector<8xf32> to vector<8x1xf32>
    %cst_90 = arith.constant 3.906250e-03 : f32
    %101 = vector.broadcast %cst_90 : f32 to vector<8x1xf32>
    %102 = arith.mulf %100, %101 : vector<8x1xf32>
    %cst_91 = arith.constant 9.99999974E-6 : f32
    %103 = vector.broadcast %cst_91 : f32 to vector<8x1xf32>
    %104 = arith.addf %102, %103 : vector<8x1xf32>
    %105 = math.rsqrt %104 : vector<8x1xf32>
    %106 = vector.broadcast %105 : vector<8x1xf32> to vector<8x324xf32>
    %107 = arith.mulf %95, %106 : vector<8x324xf32>
    %cst_92 = arith.constant 2.000000e-01 : f32
    %108 = vector.broadcast %cst_92 : f32 to vector<8x324xf32>
    %109 = arith.mulf %108, %107 : vector<8x324xf32>
    %110 = arith.maximumf %107, %109 : vector<8x324xf32>
    %c0_93 = arith.constant 0 : index
    %c0_94 = arith.constant 0 : index
    %c0_95 = arith.constant 0 : index
    %111 = vector.load %arg7[%c0_93, %c0_94, %c0_95] : memref<2x8x324xf32, #tpu.memory_space<vmem>>, vector<1x8x324xf32>
    %112 = vector.shape_cast %111 : vector<1x8x324xf32> to vector<8x324xf32>
    %113 = vector.shape_cast %110 : vector<8x324xf32> to vector<1x8x324xf32>
    tpu.vector_store %arg7[%c0_93, %c0_94, %c0_95], %113 {strides = array<i32>} : memref<2x8x324xf32, #tpu.memory_space<vmem>>, vector<1x8x324xf32>,
    %c0_96 = arith.constant 0 : index
    %c128_97 = arith.constant 128 : index
    %114 = vector.load %arg9[%c0_96, %c128_97] : memref<8x580xf32, #tpu.memory_space<vmem>>, vector<8x324xf32>
    tpu.vector_store %arg9[%c0_96, %c128_97], %110 {strides = array<i32>} : memref<8x580xf32, #tpu.memory_space<vmem>>, vector<8x324xf32>,
    %c0_98 = arith.constant 0 : index
    %c129_99 = arith.constant 129 : index
    %115 = vector.load %arg9[%c0_98, %c129_99] : memref<8x580xf32, #tpu.memory_space<vmem>>, vector<8x324xf32>
    %116 = arith.maximumf %110, %115 : vector<8x324xf32>
    %c0_100 = arith.constant 0 : index
    %c146_101 = arith.constant 146 : index
    %117 = vector.load %arg9[%c0_100, %c146_101] : memref<8x580xf32, #tpu.memory_space<vmem>>, vector<8x324xf32>
    %c0_102 = arith.constant 0 : index
    %c147_103 = arith.constant 147 : index
    %118 = vector.load %arg9[%c0_102, %c147_103] : memref<8x580xf32, #tpu.memory_space<vmem>>, vector<8x324xf32>
    %119 = arith.maximumf %117, %118 : vector<8x324xf32>
    %120 = arith.maximumf %116, %119 : vector<8x324xf32>
    %c0_104 = arith.constant 0 : index
    %c0_105 = arith.constant 0 : index
    %c0_106 = arith.constant 0 : index
    %121 = vector.load %arg8[%c0_104, %c0_105, %c0_106] : memref<2x8x324xf32, #tpu.memory_space<vmem>>, vector<1x8x324xf32>
    %122 = vector.shape_cast %121 : vector<1x8x324xf32> to vector<8x324xf32>
    %123 = vector.shape_cast %120 : vector<8x324xf32> to vector<1x8x324xf32>
    tpu.vector_store %arg8[%c0_104, %c0_105, %c0_106], %123 {strides = array<i32>} : memref<2x8x324xf32, #tpu.memory_space<vmem>>, vector<1x8x324xf32>,
    %c1 = arith.constant 1 : index
    %c0_107 = arith.constant 0 : index
    %c109_108 = arith.constant 109 : index
    %124 = vector.load %arg1[%c1, %c0_107, %c109_108] : memref<2x4x580xf32, #tpu.memory_space<vmem>>, vector<1x4x324xf32>
    %125 = vector.shape_cast %124 : vector<1x4x324xf32> to vector<4x324xf32>
    %c0_109 = arith.constant 0 : index
    %c0_110 = arith.constant 0 : index
    %126 = vector.load %arg10[%c0_109, %c0_110] : memref<36x324xf32, #tpu.memory_space<vmem>>, vector<4x324xf32>
    tpu.vector_store %arg10[%c0_109, %c0_110], %125 {strides = array<i32>} : memref<36x324xf32, #tpu.memory_space<vmem>>, vector<4x324xf32>,
    %c1_111 = arith.constant 1 : index
    %c0_112 = arith.constant 0 : index
    %c110_113 = arith.constant 110 : index
    %127 = vector.load %arg1[%c1_111, %c0_112, %c110_113] : memref<2x4x580xf32, #tpu.memory_space<vmem>>, vector<1x4x324xf32>
    %128 = vector.shape_cast %127 : vector<1x4x324xf32> to vector<4x324xf32>
    %c4_114 = arith.constant 4 : index
    %c0_115 = arith.constant 0 : index
    %129 = vector.load %arg10[%c4_114, %c0_115] : memref<36x324xf32, #tpu.memory_space<vmem>>, vector<4x324xf32>
    tpu.vector_store %arg10[%c4_114, %c0_115], %128 {strides = array<i32>} : memref<36x324xf32, #tpu.memory_space<vmem>>, vector<4x324xf32>,
    %c1_116 = arith.constant 1 : index
    %c0_117 = arith.constant 0 : index
    %c111_118 = arith.constant 111 : index
    %130 = vector.load %arg1[%c1_116, %c0_117, %c111_118] : memref<2x4x580xf32, #tpu.memory_space<vmem>>, vector<1x4x324xf32>
    %131 = vector.shape_cast %130 : vector<1x4x324xf32> to vector<4x324xf32>
    %c8_119 = arith.constant 8 : index
    %c0_120 = arith.constant 0 : index
    %132 = vector.load %arg10[%c8_119, %c0_120] : memref<36x324xf32, #tpu.memory_space<vmem>>, vector<4x324xf32>
    tpu.vector_store %arg10[%c8_119, %c0_120], %131 {strides = array<i32>} : memref<36x324xf32, #tpu.memory_space<vmem>>, vector<4x324xf32>,
    %c1_121 = arith.constant 1 : index
    %c0_122 = arith.constant 0 : index
    %c127_123 = arith.constant 127 : index
    %133 = vector.load %arg1[%c1_121, %c0_122, %c127_123] : memref<2x4x580xf32, #tpu.memory_space<vmem>>, vector<1x4x324xf32>
    %134 = vector.shape_cast %133 : vector<1x4x324xf32> to vector<4x324xf32>
    %c12_124 = arith.constant 12 : index
    %c0_125 = arith.constant 0 : index
    %135 = vector.load %arg10[%c12_124, %c0_125] : memref<36x324xf32, #tpu.memory_space<vmem>>, vector<4x324xf32>
    tpu.vector_store %arg10[%c12_124, %c0_125], %134 {strides = array<i32>} : memref<36x324xf32, #tpu.memory_space<vmem>>, vector<4x324xf32>,
    %c1_126 = arith.constant 1 : index
    %c0_127 = arith.constant 0 : index
    %c128_128 = arith.constant 128 : index
    %136 = vector.load %arg1[%c1_126, %c0_127, %c128_128] : memref<2x4x580xf32, #tpu.memory_space<vmem>>, vector<1x4x324xf32>
    %137 = vector.shape_cast %136 : vector<1x4x324xf32> to vector<4x324xf32>
    %c16_129 = arith.constant 16 : index
    %c0_130 = arith.constant 0 : index
    %138 = vector.load %arg10[%c16_129, %c0_130] : memref<36x324xf32, #tpu.memory_space<vmem>>, vector<4x324xf32>
    tpu.vector_store %arg10[%c16_129, %c0_130], %137 {strides = array<i32>} : memref<36x324xf32, #tpu.memory_space<vmem>>, vector<4x324xf32>,
    %c1_131 = arith.constant 1 : index
    %c0_132 = arith.constant 0 : index
    %c129_133 = arith.constant 129 : index
    %139 = vector.load %arg1[%c1_131, %c0_132, %c129_133] : memref<2x4x580xf32, #tpu.memory_space<vmem>>, vector<1x4x324xf32>
    %140 = vector.shape_cast %139 : vector<1x4x324xf32> to vector<4x324xf32>
    %c20_134 = arith.constant 20 : index
    %c0_135 = arith.constant 0 : index
    %141 = vector.load %arg10[%c20_134, %c0_135] : memref<36x324xf32, #tpu.memory_space<vmem>>, vector<4x324xf32>
    tpu.vector_store %arg10[%c20_134, %c0_135], %140 {strides = array<i32>} : memref<36x324xf32, #tpu.memory_space<vmem>>, vector<4x324xf32>,
    %c1_136 = arith.constant 1 : index
    %c0_137 = arith.constant 0 : index
    %c145_138 = arith.constant 145 : index
    %142 = vector.load %arg1[%c1_136, %c0_137, %c145_138] : memref<2x4x580xf32, #tpu.memory_space<vmem>>, vector<1x4x324xf32>
    %143 = vector.shape_cast %142 : vector<1x4x324xf32> to vector<4x324xf32>
    %c24_139 = arith.constant 24 : index
    %c0_140 = arith.constant 0 : index
    %144 = vector.load %arg10[%c24_139, %c0_140] : memref<36x324xf32, #tpu.memory_space<vmem>>, vector<4x324xf32>
    tpu.vector_store %arg10[%c24_139, %c0_140], %143 {strides = array<i32>} : memref<36x324xf32, #tpu.memory_space<vmem>>, vector<4x324xf32>,
    %c1_141 = arith.constant 1 : index
    %c0_142 = arith.constant 0 : index
    %c146_143 = arith.constant 146 : index
    %145 = vector.load %arg1[%c1_141, %c0_142, %c146_143] : memref<2x4x580xf32, #tpu.memory_space<vmem>>, vector<1x4x324xf32>
    %146 = vector.shape_cast %145 : vector<1x4x324xf32> to vector<4x324xf32>
    %c28_144 = arith.constant 28 : index
    %c0_145 = arith.constant 0 : index
    %147 = vector.load %arg10[%c28_144, %c0_145] : memref<36x324xf32, #tpu.memory_space<vmem>>, vector<4x324xf32>
    tpu.vector_store %arg10[%c28_144, %c0_145], %146 {strides = array<i32>} : memref<36x324xf32, #tpu.memory_space<vmem>>, vector<4x324xf32>,
    %c1_146 = arith.constant 1 : index
    %c0_147 = arith.constant 0 : index
    %c147_148 = arith.constant 147 : index
    %148 = vector.load %arg1[%c1_146, %c0_147, %c147_148] : memref<2x4x580xf32, #tpu.memory_space<vmem>>, vector<1x4x324xf32>
    %149 = vector.shape_cast %148 : vector<1x4x324xf32> to vector<4x324xf32>
    %c32_149 = arith.constant 32 : index
    %c0_150 = arith.constant 0 : index
    %150 = vector.load %arg10[%c32_149, %c0_150] : memref<36x324xf32, #tpu.memory_space<vmem>>, vector<4x324xf32>
    tpu.vector_store %arg10[%c32_149, %c0_150], %149 {strides = array<i32>} : memref<36x324xf32, #tpu.memory_space<vmem>>, vector<4x324xf32>,
    %c0_151 = arith.constant 0 : index
    %c0_152 = arith.constant 0 : index
    %151 = vector.load %arg2[%c0_151, %c0_152] : memref<8x36xf32, #tpu.memory_space<vmem>>, vector<8x36xf32>
    %c0_153 = arith.constant 0 : index
    %c0_154 = arith.constant 0 : index
    %152 = vector.load %arg10[%c0_153, %c0_154] : memref<36x324xf32, #tpu.memory_space<vmem>>, vector<36x324xf32>
    %cst_155 = arith.constant dense<0.000000e+00> : vector<8x324xf32>
    %153 = tpu.matmul %151, %152, %cst_155 {dimension_numbers = #tpu.dot_dimension_numbers<[1], [0], [0], [1], [0, 0, 1, 1], [], []>} : vector<8x36xf32>, vector<36x324xf32>, vector<8x324xf32> -> vector<8x324xf32>
    %c0_156 = arith.constant 0 : index
    %c0_157 = arith.constant 0 : index
    %154 = vector.load %arg3[%c0_156, %c0_157] : memref<8x1xf32, #tpu.memory_space<vmem>>, vector<8x1xf32>
    %155 = vector.broadcast %154 : vector<8x1xf32> to vector<8x324xf32>
    %156 = arith.addf %153, %155 : vector<8x324xf32>
    %157 = vector.broadcast %0 : vector<1x324xf32> to vector<8x324xf32>
    %158 = arith.mulf %156, %157 : vector<8x324xf32>
    %cst_158 = arith.constant dense<0.000000e+00> : vector<8xf32>
    %159 = vector.multi_reduction <add>, %158, %cst_158 [1] : vector<8x324xf32> to vector<8xf32>
    %160 = vector.shape_cast %159 : vector<8xf32> to vector<8x1xf32>
    %cst_159 = arith.constant 3.906250e-03 : f32
    %161 = vector.broadcast %cst_159 : f32 to vector<8x1xf32>
    %162 = arith.mulf %160, %161 : vector<8x1xf32>
    %163 = vector.broadcast %162 : vector<8x1xf32> to vector<8x324xf32>
    %164 = arith.subf %156, %163 : vector<8x324xf32>
    %165 = vector.broadcast %0 : vector<1x324xf32> to vector<8x324xf32>
    %166 = arith.mulf %164, %165 : vector<8x324xf32>
    %167 = arith.mulf %166, %166 : vector<8x324xf32>
    %cst_160 = arith.constant dense<0.000000e+00> : vector<8xf32>
    %168 = vector.multi_reduction <add>, %167, %cst_160 [1] : vector<8x324xf32> to vector<8xf32>
    %169 = vector.shape_cast %168 : vector<8xf32> to vector<8x1xf32>
    %cst_161 = arith.constant 3.906250e-03 : f32
    %170 = vector.broadcast %cst_161 : f32 to vector<8x1xf32>
    %171 = arith.mulf %169, %170 : vector<8x1xf32>
    %cst_162 = arith.constant 9.99999974E-6 : f32
    %172 = vector.broadcast %cst_162 : f32 to vector<8x1xf32>
    %173 = arith.addf %171, %172 : vector<8x1xf32>
    %174 = math.rsqrt %173 : vector<8x1xf32>
    %175 = vector.broadcast %174 : vector<8x1xf32> to vector<8x324xf32>
    %176 = arith.mulf %164, %175 : vector<8x324xf32>
    %cst_163 = arith.constant 2.000000e-01 : f32
    %177 = vector.broadcast %cst_163 : f32 to vector<8x324xf32>
    %178 = arith.mulf %177, %176 : vector<8x324xf32>
    %179 = arith.maximumf %176, %178 : vector<8x324xf32>
    %180 = vector.broadcast %0 : vector<1x324xf32> to vector<8x324xf32>
    %181 = arith.mulf %179, %180 : vector<8x324xf32>
    %c0_164 = arith.constant 0 : index
    %c128_165 = arith.constant 128 : index
    %182 = vector.load %arg9[%c0_164, %c128_165] : memref<8x580xf32, #tpu.memory_space<vmem>>, vector<8x324xf32>
    tpu.vector_store %arg9[%c0_164, %c128_165], %181 {strides = array<i32>} : memref<8x580xf32, #tpu.memory_space<vmem>>, vector<8x324xf32>,
    %c0_166 = arith.constant 0 : index
    %c109_167 = arith.constant 109 : index
    %183 = vector.load %arg9[%c0_166, %c109_167] : memref<8x580xf32, #tpu.memory_space<vmem>>, vector<8x324xf32>
    %c0_168 = arith.constant 0 : index
    %c0_169 = arith.constant 0 : index
    %184 = vector.load %arg11[%c0_168, %c0_169] : memref<72x324xf32, #tpu.memory_space<vmem>>, vector<8x324xf32>
    tpu.vector_store %arg11[%c0_168, %c0_169], %183 {strides = array<i32>} : memref<72x324xf32, #tpu.memory_space<vmem>>, vector<8x324xf32>,
    %c0_170 = arith.constant 0 : index
    %c110_171 = arith.constant 110 : index
    %185 = vector.load %arg9[%c0_170, %c110_171] : memref<8x580xf32, #tpu.memory_space<vmem>>, vector<8x324xf32>
    %c8_172 = arith.constant 8 : index
    %c0_173 = arith.constant 0 : index
    %186 = vector.load %arg11[%c8_172, %c0_173] : memref<72x324xf32, #tpu.memory_space<vmem>>, vector<8x324xf32>
    tpu.vector_store %arg11[%c8_172, %c0_173], %185 {strides = array<i32>} : memref<72x324xf32, #tpu.memory_space<vmem>>, vector<8x324xf32>,
    %c0_174 = arith.constant 0 : index
    %c111_175 = arith.constant 111 : index
    %187 = vector.load %arg9[%c0_174, %c111_175] : memref<8x580xf32, #tpu.memory_space<vmem>>, vector<8x324xf32>
    %c16_176 = arith.constant 16 : index
    %c0_177 = arith.constant 0 : index
    %188 = vector.load %arg11[%c16_176, %c0_177] : memref<72x324xf32, #tpu.memory_space<vmem>>, vector<8x324xf32>
    tpu.vector_store %arg11[%c16_176, %c0_177], %187 {strides = array<i32>} : memref<72x324xf32, #tpu.memory_space<vmem>>, vector<8x324xf32>,
    %c0_178 = arith.constant 0 : index
    %c127_179 = arith.constant 127 : index
    %189 = vector.load %arg9[%c0_178, %c127_179] : memref<8x580xf32, #tpu.memory_space<vmem>>, vector<8x324xf32>
    %c24_180 = arith.constant 24 : index
    %c0_181 = arith.constant 0 : index
    %190 = vector.load %arg11[%c24_180, %c0_181] : memref<72x324xf32, #tpu.memory_space<vmem>>, vector<8x324xf32>
    tpu.vector_store %arg11[%c24_180, %c0_181], %189 {strides = array<i32>} : memref<72x324xf32, #tpu.memory_space<vmem>>, vector<8x324xf32>,
    %c0_182 = arith.constant 0 : index
    %c128_183 = arith.constant 128 : index
    %191 = vector.load %arg9[%c0_182, %c128_183] : memref<8x580xf32, #tpu.memory_space<vmem>>, vector<8x324xf32>
    %c32_184 = arith.constant 32 : index
    %c0_185 = arith.constant 0 : index
    %192 = vector.load %arg11[%c32_184, %c0_185] : memref<72x324xf32, #tpu.memory_space<vmem>>, vector<8x324xf32>
    tpu.vector_store %arg11[%c32_184, %c0_185], %191 {strides = array<i32>} : memref<72x324xf32, #tpu.memory_space<vmem>>, vector<8x324xf32>,
    %c0_186 = arith.constant 0 : index
    %c129_187 = arith.constant 129 : index
    %193 = vector.load %arg9[%c0_186, %c129_187] : memref<8x580xf32, #tpu.memory_space<vmem>>, vector<8x324xf32>
    %c40_188 = arith.constant 40 : index
    %c0_189 = arith.constant 0 : index
    %194 = vector.load %arg11[%c40_188, %c0_189] : memref<72x324xf32, #tpu.memory_space<vmem>>, vector<8x324xf32>
    tpu.vector_store %arg11[%c40_188, %c0_189], %193 {strides = array<i32>} : memref<72x324xf32, #tpu.memory_space<vmem>>, vector<8x324xf32>,
    %c0_190 = arith.constant 0 : index
    %c145_191 = arith.constant 145 : index
    %195 = vector.load %arg9[%c0_190, %c145_191] : memref<8x580xf32, #tpu.memory_space<vmem>>, vector<8x324xf32>
    %c48_192 = arith.constant 48 : index
    %c0_193 = arith.constant 0 : index
    %196 = vector.load %arg11[%c48_192, %c0_193] : memref<72x324xf32, #tpu.memory_space<vmem>>, vector<8x324xf32>
    tpu.vector_store %arg11[%c48_192, %c0_193], %195 {strides = array<i32>} : memref<72x324xf32, #tpu.memory_space<vmem>>, vector<8x324xf32>,
    %c0_194 = arith.constant 0 : index
    %c146_195 = arith.constant 146 : index
    %197 = vector.load %arg9[%c0_194, %c146_195] : memref<8x580xf32, #tpu.memory_space<vmem>>, vector<8x324xf32>
    %c56_196 = arith.constant 56 : index
    %c0_197 = arith.constant 0 : index
    %198 = vector.load %arg11[%c56_196, %c0_197] : memref<72x324xf32, #tpu.memory_space<vmem>>, vector<8x324xf32>
    tpu.vector_store %arg11[%c56_196, %c0_197], %197 {strides = array<i32>} : memref<72x324xf32, #tpu.memory_space<vmem>>, vector<8x324xf32>,
    %c0_198 = arith.constant 0 : index
    %c147_199 = arith.constant 147 : index
    %199 = vector.load %arg9[%c0_198, %c147_199] : memref<8x580xf32, #tpu.memory_space<vmem>>, vector<8x324xf32>
    %c64_200 = arith.constant 64 : index
    %c0_201 = arith.constant 0 : index
    %200 = vector.load %arg11[%c64_200, %c0_201] : memref<72x324xf32, #tpu.memory_space<vmem>>, vector<8x324xf32>
    tpu.vector_store %arg11[%c64_200, %c0_201], %199 {strides = array<i32>} : memref<72x324xf32, #tpu.memory_space<vmem>>, vector<8x324xf32>,
    %c0_202 = arith.constant 0 : index
    %c0_203 = arith.constant 0 : index
    %201 = vector.load %arg4[%c0_202, %c0_203] : memref<8x72xf32, #tpu.memory_space<vmem>>, vector<8x72xf32>
    %c0_204 = arith.constant 0 : index
    %c0_205 = arith.constant 0 : index
    %202 = vector.load %arg11[%c0_204, %c0_205] : memref<72x324xf32, #tpu.memory_space<vmem>>, vector<72x324xf32>
    %cst_206 = arith.constant dense<0.000000e+00> : vector<8x324xf32>
    %203 = tpu.matmul %201, %202, %cst_206 {dimension_numbers = #tpu.dot_dimension_numbers<[1], [0], [0], [1], [0, 0, 1, 1], [], []>} : vector<8x72xf32>, vector<72x324xf32>, vector<8x324xf32> -> vector<8x324xf32>
    %c0_207 = arith.constant 0 : index
    %c0_208 = arith.constant 0 : index
    %204 = vector.load %arg5[%c0_207, %c0_208] : memref<8x1xf32, #tpu.memory_space<vmem>>, vector<8x1xf32>
    %205 = vector.broadcast %204 : vector<8x1xf32> to vector<8x324xf32>
    %206 = arith.addf %203, %205 : vector<8x324xf32>
    %207 = vector.broadcast %0 : vector<1x324xf32> to vector<8x324xf32>
    %208 = arith.mulf %206, %207 : vector<8x324xf32>
    %cst_209 = arith.constant dense<0.000000e+00> : vector<8xf32>
    %209 = vector.multi_reduction <add>, %208, %cst_209 [1] : vector<8x324xf32> to vector<8xf32>
    %210 = vector.shape_cast %209 : vector<8xf32> to vector<8x1xf32>
    %cst_210 = arith.constant 3.906250e-03 : f32
    %211 = vector.broadcast %cst_210 : f32 to vector<8x1xf32>
    %212 = arith.mulf %210, %211 : vector<8x1xf32>
    %213 = vector.broadcast %212 : vector<8x1xf32> to vector<8x324xf32>
    %214 = arith.subf %206, %213 : vector<8x324xf32>
    %215 = vector.broadcast %0 : vector<1x324xf32> to vector<8x324xf32>
    %216 = arith.mulf %214, %215 : vector<8x324xf32>
    %217 = arith.mulf %216, %216 : vector<8x324xf32>
    %cst_211 = arith.constant dense<0.000000e+00> : vector<8xf32>
    %218 = vector.multi_reduction <add>, %217, %cst_211 [1] : vector<8x324xf32> to vector<8xf32>
    %219 = vector.shape_cast %218 : vector<8xf32> to vector<8x1xf32>
    %cst_212 = arith.constant 3.906250e-03 : f32
    %220 = vector.broadcast %cst_212 : f32 to vector<8x1xf32>
    %221 = arith.mulf %219, %220 : vector<8x1xf32>
    %cst_213 = arith.constant 9.99999974E-6 : f32
    %222 = vector.broadcast %cst_213 : f32 to vector<8x1xf32>
    %223 = arith.addf %221, %222 : vector<8x1xf32>
    %224 = math.rsqrt %223 : vector<8x1xf32>
    %225 = vector.broadcast %224 : vector<8x1xf32> to vector<8x324xf32>
    %226 = arith.mulf %214, %225 : vector<8x324xf32>
    %cst_214 = arith.constant 2.000000e-01 : f32
    %227 = vector.broadcast %cst_214 : f32 to vector<8x324xf32>
    %228 = arith.mulf %227, %226 : vector<8x324xf32>
    %229 = arith.maximumf %226, %228 : vector<8x324xf32>
    %c1_215 = arith.constant 1 : index
    %c0_216 = arith.constant 0 : index
    %c0_217 = arith.constant 0 : index
    %230 = vector.load %arg7[%c1_215, %c0_216, %c0_217] : memref<2x8x324xf32, #tpu.memory_space<vmem>>, vector<1x8x324xf32>
    %231 = vector.shape_cast %230 : vector<1x8x324xf32> to vector<8x324xf32>
    %232 = vector.shape_cast %229 : vector<8x324xf32> to vector<1x8x324xf32>
    tpu.vector_store %arg7[%c1_215, %c0_216, %c0_217], %232 {strides = array<i32>} : memref<2x8x324xf32, #tpu.memory_space<vmem>>, vector<1x8x324xf32>,
    %c0_218 = arith.constant 0 : index
    %c128_219 = arith.constant 128 : index
    %233 = vector.load %arg9[%c0_218, %c128_219] : memref<8x580xf32, #tpu.memory_space<vmem>>, vector<8x324xf32>
    tpu.vector_store %arg9[%c0_218, %c128_219], %229 {strides = array<i32>} : memref<8x580xf32, #tpu.memory_space<vmem>>, vector<8x324xf32>,
    %c0_220 = arith.constant 0 : index
    %c129_221 = arith.constant 129 : index
    %234 = vector.load %arg9[%c0_220, %c129_221] : memref<8x580xf32, #tpu.memory_space<vmem>>, vector<8x324xf32>
    %235 = arith.maximumf %229, %234 : vector<8x324xf32>
    %c0_222 = arith.constant 0 : index
    %c146_223 = arith.constant 146 : index
    %236 = vector.load %arg9[%c0_222, %c146_223] : memref<8x580xf32, #tpu.memory_space<vmem>>, vector<8x324xf32>
    %c0_224 = arith.constant 0 : index
    %c147_225 = arith.constant 147 : index
    %237 = vector.load %arg9[%c0_224, %c147_225] : memref<8x580xf32, #tpu.memory_space<vmem>>, vector<8x324xf32>
    %238 = arith.maximumf %236, %237 : vector<8x324xf32>
    %239 = arith.maximumf %235, %238 : vector<8x324xf32>
    %c1_226 = arith.constant 1 : index
    %c0_227 = arith.constant 0 : index
    %c0_228 = arith.constant 0 : index
    %240 = vector.load %arg8[%c1_226, %c0_227, %c0_228] : memref<2x8x324xf32, #tpu.memory_space<vmem>>, vector<1x8x324xf32>
    %241 = vector.shape_cast %240 : vector<1x8x324xf32> to vector<8x324xf32>
    %242 = vector.shape_cast %239 : vector<8x324xf32> to vector<1x8x324xf32>
    tpu.vector_store %arg8[%c1_226, %c0_227, %c0_228], %242 {strides = array<i32>} : memref<2x8x324xf32, #tpu.memory_space<vmem>>, vector<1x8x324xf32>,
    return
  }
  func.func @transform_0(%arg0: i32) -> (i32, i32, i32) {
    %c0_i32 = arith.constant 0 : i32
    %c0_i32_0 = arith.constant 0 : i32
    %c0_i32_1 = arith.constant 0 : i32
    return %arg0, %c0_i32, %c0_i32_0 : i32, i32, i32
  }
  func.func @transform_1(%arg0: i32) -> (i32, i32) {
    %c0_i32 = arith.constant 0 : i32
    %c0_i32_0 = arith.constant 0 : i32
    %c0_i32_1 = arith.constant 0 : i32
    return %c0_i32, %c0_i32_0 : i32, i32
  }
  func.func @transform_2(%arg0: i32) -> (i32, i32) {
    %c0_i32 = arith.constant 0 : i32
    %c0_i32_0 = arith.constant 0 : i32
    %c0_i32_1 = arith.constant 0 : i32
    return %c0_i32, %c0_i32_0 : i32, i32
  }
  func.func @transform_3(%arg0: i32) -> (i32, i32) {
    %c0_i32 = arith.constant 0 : i32
    %c0_i32_0 = arith.constant 0 : i32
    %c0_i32_1 = arith.constant 0 : i32
    return %c0_i32, %c0_i32_0 : i32, i32
  }
  func.func @transform_4(%arg0: i32) -> (i32, i32) {
    %c0_i32 = arith.constant 0 : i32
    %c0_i32_0 = arith.constant 0 : i32
    %c0_i32_1 = arith.constant 0 : i32
    return %c0_i32, %c0_i32_0 : i32, i32
  }
  func.func @transform_5(%arg0: i32) -> (i32, i32) {
    %c0_i32 = arith.constant 0 : i32
    %c0_i32_0 = arith.constant 0 : i32
    %c0_i32_1 = arith.constant 0 : i32
    return %c0_i32, %c0_i32_0 : i32, i32
  }
  func.func @transform_6(%arg0: i32) -> (i32, i32, i32) {
    %c0_i32 = arith.constant 0 : i32
    %c0_i32_0 = arith.constant 0 : i32
    %c0_i32_1 = arith.constant 0 : i32
    return %arg0, %c0_i32, %c0_i32_0 : i32, i32, i32
  }
  func.func @transform_7(%arg0: i32) -> (i32, i32, i32) {
    %c0_i32 = arith.constant 0 : i32
    %c0_i32_0 = arith.constant 0 : i32
    %c0_i32_1 = arith.constant 0 : i32
    return %arg0, %c0_i32, %c0_i32_0 : i32, i32, i32
  }
}

</mosaic_0001>

<llo_original>
// kernel: downconv_pallas.1
$region0: #{downconv_pallas.1}
  #allocation0 [shape = 'u32[]', space=smem, size = 0x4, offset = 0x4, fixed_abs, tag = 'smem constant byte address 0x4 - core index']
  #allocation1 [shape = 'u32[72,128]{1,0:T(1,128)}', space=vmem, size = 0x9000, scoped, tag = 'internal scratch']
  #allocation2 [shape = 'f32[8,580]{1,0:T(8,128)}', space=vmem, size = 0x5000, scoped, tag = 'scratch operand']
  #allocation3 [shape = 'f32[36,324]{1,0:T(8,128)}', space=vmem, size = 0xf000, scoped, tag = 'scratch operand']
  #allocation4 [shape = 'f32[72,324]{1,0:T(8,128)}', space=vmem, size = 0x1b000, scoped, tag = 'scratch operand']
  %s0 = inlined_call_operand.vmem [shape: f32[2,4,580], index: 0, kind: input, shape index: {}]
  %s1 = inlined_call_operand.vmem [shape: f32[8,36], index: 1, kind: input, shape index: {}]
  %s2 = inlined_call_operand.vmem [shape: f32[8,1], index: 2, kind: input, shape index: {}]
  %s3 = inlined_call_operand.vmem [shape: f32[8,72], index: 3, kind: input, shape index: {}]
  %s4 = inlined_call_operand.vmem [shape: f32[8,1], index: 4, kind: input, shape index: {}]
  %s5 = inlined_call_operand.vmem [shape: f32[1,324], index: 5, kind: input, shape index: {}]
  %s6 = inlined_call_operand.vmem [shape: f32[2,8,324], index: 6, kind: output, shape index: {0}]
  %s7 = inlined_call_operand.vmem [shape: f32[2,8,324], index: 7, kind: output, shape index: {1}]
  %8 = xla_tuple %s6, %s7
  %s9 = sld [smem:[#allocation0]]
  $region42: #{downconv_pallas.1} parent=0
    _
  %s11 = ssub.s32 1, %s9
  %s12 = scalar_select 0, %s11, %s9
  // Predicated region
  $region2: #{downconv_pallas.1} parent=0 // pred_check
    _
  $region3: #{downconv_pallas.1} parent=0 // pred_check_branch
    %14 = sbr.rel (0) target = $region5
  $region4: #{downconv_pallas.1} parent=0 // pred_region
    _
  $region5: #{downconv_pallas.1} parent=0 // pred_fallthru
    _
  // Predicated region
  $region6: #{downconv_pallas.1} parent=0 // pred_check
    _
  $region7: #{downconv_pallas.1} parent=0 // pred_check_branch
    %16 = sbr.rel (0) target = $region9
  $region8: #{downconv_pallas.1} parent=0 // pred_region
    _
  $region9: #{downconv_pallas.1} parent=0 // pred_fallthru
    _
  // Predicated region
  $region10: #{downconv_pallas.1} parent=0 // pred_check
    _
  $region11: #{downconv_pallas.1} parent=0 // pred_check_branch
    %18 = sbr.rel (0) target = $region13
  $region12: #{downconv_pallas.1} parent=0 // pred_region
    _
  $region13: #{downconv_pallas.1} parent=0 // pred_fallthru
    _
  // Predicated region
  $region14: #{downconv_pallas.1} parent=0 // pred_check
    _
  $region15: #{downconv_pallas.1} parent=0 // pred_check_branch
    %20 = sbr.rel (0) target = $region17
  $region16: #{downconv_pallas.1} parent=0 // pred_region
    _
  $region17: #{downconv_pallas.1} parent=0 // pred_fallthru
    _
  // Predicated region
  $region18: #{downconv_pallas.1} parent=0 // pred_check
    _
  $region19: #{downconv_pallas.1} parent=0 // pred_check_branch
    %22 = sbr.rel (0) target = $region21
  $region20: #{downconv_pallas.1} parent=0 // pred_region
    _
  $region21: #{downconv_pallas.1} parent=0 // pred_fallthru
    _
  // Predicated region
  $region22: #{downconv_pallas.1} parent=0 // pred_check
    _
  $region23: #{downconv_pallas.1} parent=0 // pred_check_branch
    %24 = sbr.rel (0) target = $region25
  $region24: #{downconv_pallas.1} parent=0 // pred_region
    _
  $region25: #{downconv_pallas.1} parent=0 // pred_fallthru
    _
  %v25 = vld [vmem:[%s5] sm:$0x7]
  %26 = vst [vmem:[#allocation2] sm:$0xff] 0.0
  %vm27 = vcmask 1048096
  %28 = vst.msk [vmem:[#allocation2 + $0x18] sm:$0xff] %vm27, 0.0
  %vm29 = vcmask 556032
  %30 = vst.msk [vmem:[#allocation2 + $0x20] sm:$0xff] %vm29, 0.0
  %v31 = vld [vmem:[%s0] sm:$0xff]
  %v32 = vld [vmem:[%s0 + $0x8] sm:$0xff]
  %35 = vst [vmem:[#allocation1] ss:$2 sm:$0xff] %v31
  %s36 = scalar_lea.vmem [#allocation1], 16
  %37 = vst [vmem:[%s36] ss:$2 sm:$0xff] %v32
  %v38 = vld.sshfl [vmem:[#allocation1] sm:$0xff pattern:$0x75316420]
  %v39 = vld.sshfl [vmem:[#allocation1 + $0x8] sm:$0xff pattern:$0x75316420]
  %v40 = vld.sshfl [vmem:[#allocation1 + $0x10] sm:$0xff pattern:$0x75316420]
  %v41 = vld.sshfl [vmem:[#allocation1 + $0x18] sm:$0xff pattern:$0x75316420]
  %42 = vrot.lane.b32.xlu0 %v38, 19
  %v43 = vpop.permute.xlu0 %42
  %44 = vrot.lane.b32.xlu0 %v39, 19
  %v45 = vpop.permute.xlu0 %44
  %46 = vrot.lane.b32.xlu0 %v40, 19
  %v47 = vpop.permute.xlu0 %46
  %48 = vrot.lane.b32.xlu0 %v41, 19
  %v49 = vpop.permute.xlu0 %48
  %vm50 = vcmask 154624
  %v51 = vsel %vm50, %v43, %v45
  %v52 = vsel %vm50, %v45, %v47
  %v53 = vsel %vm50, %v47, %v49
  %57 = vst [vmem:[#allocation3] sm:$0xf] %v51
  %58 = vst [vmem:[#allocation3 + $0x8] sm:$0xf] %v52
  %vm59 = vcmask 551936
  %60 = vst.msk [vmem:[#allocation3 + $0x10] sm:$0xf] %vm59, %v53
  %v61 = vld [vmem:[%s0] sm:$0xff]
  %v62 = vld [vmem:[%s0 + $0x8] sm:$0xff]
  %s65 = scalar_lea.vmem [#allocation1], 1
  %66 = vst [vmem:[%s65] ss:$2 sm:$0xff] %v61
  %s67 = scalar_lea.vmem [#allocation1], 17
  %68 = vst [vmem:[%s67] ss:$2 sm:$0xff] %v62
  %v69 = vld.sshfl [vmem:[#allocation1] sm:$0xff pattern:$0x75316420]
  %v70 = vld.sshfl [vmem:[#allocation1 + $0x8] sm:$0xff pattern:$0x75316420]
  %v71 = vld.sshfl [vmem:[#allocation1 + $0x10] sm:$0xff pattern:$0x75316420]
  %v72 = vld.sshfl [vmem:[#allocation1 + $0x18] sm:$0xff pattern:$0x75316420]
  %73 = vrot.lane.b32.xlu0 %v69, 18
  %v74 = vpop.permute.xlu0 %73
  %75 = vrot.lane.b32.xlu0 %v70, 18
  %v76 = vpop.permute.xlu0 %75
  %77 = vrot.lane.b32.xlu0 %v71, 18
  %v78 = vpop.permute.xlu0 %77
  %79 = vrot.lane.b32.xlu0 %v72, 18
  %v80 = vpop.permute.xlu0 %79
  %vm81 = vcmask 146432
  %v82 = vsel %vm81, %v74, %v76
  %v83 = vsel %vm81, %v76, %v78
  %v84 = vsel %vm81, %v78, %v80
  %88 = vst [vmem:[#allocation3] sm:$0xf0] %v82
  %89 = vst [vmem:[#allocation3 + $0x8] sm:$0xf0] %v83
  %vm90 = vcmask 556036
  %91 = vst.msk [vmem:[#allocation3 + $0x10] sm:$0xf0] %vm90, %v84
  %v92 = vld [vmem:[%s0] sm:$0xff]
  %v93 = vld [vmem:[%s0 + $0x8] sm:$0xff]
  %96 = vst [vmem:[#allocation1] ss:$2 sm:$0xff] %v92
  %s97 = scalar_lea.vmem [#allocation1], 16
  %98 = vst [vmem:[%s97] ss:$2 sm:$0xff] %v93
  %v99 = vld.sshfl [vmem:[#allocation1] sm:$0xff pattern:$0x75316420]
  %v100 = vld.sshfl [vmem:[#allocation1 + $0x8] sm:$0xff pattern:$0x75316420]
  %v101 = vld.sshfl [vmem:[#allocation1 + $0x10] sm:$0xff pattern:$0x75316420]
  %v102 = vld.sshfl [vmem:[#allocation1 + $0x18] sm:$0xff pattern:$0x75316420]
  %103 = vrot.lane.b32.xlu0 %v99, 17
  %v104 = vpop.permute.xlu0 %103
  %105 = vrot.lane.b32.xlu0 %v100, 17
  %v106 = vpop.permute.xlu0 %105
  %107 = vrot.lane.b32.xlu0 %v101, 17
  %v108 = vpop.permute.xlu0 %107
  %109 = vrot.lane.b32.xlu0 %v102, 17
  %v110 = vpop.permute.xlu0 %109
  %vm111 = vcmask 138240
  %v112 = vsel %vm111, %v104, %v106
  %v113 = vsel %vm111, %v106, %v108
  %v114 = vsel %vm111, %v108, %v110
  %118 = vst [vmem:[#allocation3 + $0x18] sm:$0xf] %v112
  %119 = vst [vmem:[#allocation3 + $0x20] sm:$0xf] %v113
  %120 = vst.msk [vmem:[#allocation3 + $0x28] sm:$0xf] %vm59, %v114
  %v121 = vld [vmem:[%s0] sm:$0xff]
  %v122 = vld [vmem:[%s0 + $0x8] sm:$0xff]
  %s125 = scalar_lea.vmem [#allocation1], 1
  %126 = vst [vmem:[%s125] ss:$2 sm:$0xff] %v121
  %s127 = scalar_lea.vmem [#allocation1], 17
  %128 = vst [vmem:[%s127] ss:$2 sm:$0xff] %v122
  %v129 = vld.sshfl [vmem:[#allocation1] sm:$0xff pattern:$0x75316420]
  %v130 = vld.sshfl [vmem:[#allocation1 + $0x8] sm:$0xff pattern:$0x75316420]
  %v131 = vld.sshfl [vmem:[#allocation1 + $0x10] sm:$0xff pattern:$0x75316420]
  %v132 = vld.sshfl [vmem:[#allocation1 + $0x18] sm:$0xff pattern:$0x75316420]
  %133 = vrot.lane.b32.xlu0 %v129, 1
  %v134 = vpop.permute.xlu0 %133
  %135 = vrot.lane.b32.xlu0 %v130, 1
  %v136 = vpop.permute.xlu0 %135
  %137 = vrot.lane.b32.xlu0 %v131, 1
  %v138 = vpop.permute.xlu0 %137
  %139 = vrot.lane.b32.xlu0 %v132, 1
  %v140 = vpop.permute.xlu0 %139
  %vm141 = vcmask 7168
  %v142 = vsel %vm141, %v134, %v136
  %v143 = vsel %vm141, %v136, %v138
  %v144 = vsel %vm141, %v138, %v140
  %148 = vst [vmem:[#allocation3 + $0x18] sm:$0xf0] %v142
  %149 = vst [vmem:[#allocation3 + $0x20] sm:$0xf0] %v143
  %150 = vst.msk [vmem:[#allocation3 + $0x28] sm:$0xf0] %vm90, %v144
  %v151 = vld [vmem:[%s0 + $0x4] sm:$0xff]
  %v152 = vld [vmem:[%s0 + $0xc] sm:$0xf]
  %155 = vst [vmem:[#allocation1] ss:$2 sm:$0xff] %v151
  %s156 = scalar_lea.vmem [#allocation1], 16
  %157 = vst [vmem:[%s156] ss:$2 sm:$0xff] %v152
  %v158 = vld.sshfl [vmem:[#allocation1] sm:$0xff pattern:$0x75316420]
  %v159 = vld.sshfl [vmem:[#allocation1 + $0x8] sm:$0xff pattern:$0x75316420]
  %v160 = vld.sshfl [vmem:[#allocation1 + $0x10] sm:$0xff pattern:$0x75316420]
  %164 = vst [vmem:[#allocation3 + $0x30] sm:$0xf] %v158
  %165 = vst [vmem:[#allocation3 + $0x38] sm:$0xf] %v159
  %166 = vst.msk [vmem:[#allocation3 + $0x40] sm:$0xf] %vm59, %v160
  %v167 = vld [vmem:[%s0 + $0x4] sm:$0xff]
  %v168 = vld [vmem:[%s0 + $0xc] sm:$0xf]
  %s171 = scalar_lea.vmem [#allocation1], 1
  %172 = vst [vmem:[%s171] ss:$2 sm:$0xff] %v167
  %s173 = scalar_lea.vmem [#allocation1], 17
  %174 = vst [vmem:[%s173] ss:$2 sm:$0xff] %v168
  %v175 = vld.sshfl [vmem:[#allocation1] sm:$0xff pattern:$0x75316420]
  %v176 = vld.sshfl [vmem:[#allocation1 + $0x8] sm:$0xff pattern:$0x75316420]
  %v177 = vld.sshfl [vmem:[#allocation1 + $0x10] sm:$0xff pattern:$0x75316420]
  %178 = vrot.lane.b32.xlu0 %v175, 127
  %v179 = vpop.permute.xlu0 %178
  %180 = vrot.lane.b32.xlu0 %v176, 127
  %v181 = vpop.permute.xlu0 %180
  %182 = vrot.lane.b32.xlu0 %v177, 127
  %v183 = vpop.permute.xlu0 %182
  %vm184 = vcmask 1039360
  %v185 = vsel %vm184, %v179, %v181
  %v186 = vsel %vm184, %v181, %v183
  %190 = vst [vmem:[#allocation3 + $0x30] sm:$0xf0] %v185
  %191 = vst [vmem:[#allocation3 + $0x38] sm:$0xf0] %v186
  %192 = vst.msk [vmem:[#allocation3 + $0x40] sm:$0xf0] %vm90, %v183
  %v193 = vld [vmem:[%s0 + $0x4] sm:$0xff]
  %v194 = vld [vmem:[%s0 + $0xc] sm:$0xf]
  %197 = vst [vmem:[#allocation1] ss:$2 sm:$0xff] %v193
  %s198 = scalar_lea.vmem [#allocation1], 16
  %199 = vst [vmem:[%s198] ss:$2 sm:$0xff] %v194
  %v200 = vld.sshfl [vmem:[#allocation1] sm:$0xff pattern:$0x75316420]
  %v201 = vld.sshfl [vmem:[#allocation1 + $0x8] sm:$0xff pattern:$0x75316420]
  %v202 = vld.sshfl [vmem:[#allocation1 + $0x10] sm:$0xff pattern:$0x75316420]
  %203 = vrot.lane.b32.xlu0 %v200, 111
  %v204 = vpop.permute.xlu0 %203
  %205 = vrot.lane.b32.xlu0 %v201, 111
  %v206 = vpop.permute.xlu0 %205
  %207 = vrot.lane.b32.xlu0 %v202, 111
  %v208 = vpop.permute.xlu0 %207
  %vm209 = vcmask 908288
  %v210 = vsel %vm209, %v204, %v206
  %v211 = vsel %vm209, %v206, %v208
  %215 = vst [vmem:[#allocation3 + $0x48] sm:$0xf] %v210
  %216 = vst [vmem:[#allocation3 + $0x50] sm:$0xf] %v211
  %217 = vst.msk [vmem:[#allocation3 + $0x58] sm:$0xf] %vm59, %v208
  %v218 = vld [vmem:[%s0 + $0x4] sm:$0xff]
  %v219 = vld [vmem:[%s0 + $0xc] sm:$0xf]
  %s222 = scalar_lea.vmem [#allocation1], 1
  %223 = vst [vmem:[%s222] ss:$2 sm:$0xff] %v218
  %s224 = scalar_lea.vmem [#allocation1], 17
  %225 = vst [vmem:[%s224] ss:$2 sm:$0xff] %v219
  %v226 = vld.sshfl [vmem:[#allocation1] sm:$0xff pattern:$0x75316420]
  %v227 = vld.sshfl [vmem:[#allocation1 + $0x8] sm:$0xff pattern:$0x75316420]
  %v228 = vld.sshfl [vmem:[#allocation1 + $0x10] sm:$0xff pattern:$0x75316420]
  %229 = vrot.lane.b32.xlu0 %v226, 110
  %v230 = vpop.permute.xlu0 %229
  %231 = vrot.lane.b32.xlu0 %v227, 110
  %v232 = vpop.permute.xlu0 %231
  %233 = vrot.lane.b32.xlu0 %v228, 110
  %v234 = vpop.permute.xlu0 %233
  %vm235 = vcmask 900096
  %v236 = vsel %vm235, %v230, %v232
  %v237 = vsel %vm235, %v232, %v234
  %241 = vst [vmem:[#allocation3 + $0x48] sm:$0xf0] %v236
  %242 = vst [vmem:[#allocation3 + $0x50] sm:$0xf0] %v237
  %243 = vst.msk [vmem:[#allocation3 + $0x58] sm:$0xf0] %vm90, %v234
  %v244 = vld [vmem:[%s0 + $0x4] sm:$0xff]
  %v245 = vld [vmem:[%s0 + $0xc] sm:$0xf]
  %248 = vst [vmem:[#allocation1] ss:$2 sm:$0xff] %v244
  %s249 = scalar_lea.vmem [#allocation1], 16
  %250 = vst [vmem:[%s249] ss:$2 sm:$0xff] %v245
  %v251 = vld.sshfl [vmem:[#allocation1] sm:$0xff pattern:$0x75316420]
  %v252 = vld.sshfl [vmem:[#allocation1 + $0x8] sm:$0xff pattern:$0x75316420]
  %v253 = vld.sshfl [vmem:[#allocation1 + $0x10] sm:$0xff pattern:$0x75316420]
  %254 = vrot.lane.b32.xlu0 %v251, 109
  %v255 = vpop.permute.xlu0 %254
  %256 = vrot.lane.b32.xlu0 %v252, 109
  %v257 = vpop.permute.xlu0 %256
  %258 = vrot.lane.b32.xlu0 %v253, 109
  %v259 = vpop.permute.xlu0 %258
  %vm260 = vcmask 891904
  %v261 = vsel %vm260, %v255, %v257
  %v262 = vsel %vm260, %v257, %v259
  %266 = vst [vmem:[#allocation3 + $0x60] sm:$0xf] %v261
  %267 = vst [vmem:[#allocation3 + $0x68] sm:$0xf] %v262
  %268 = vst.msk [vmem:[#allocation3 + $0x70] sm:$0xf] %vm59, %v259
  %v269 = vld [vmem:[%s1] sm:$0xff]
  %v270 = vld [vmem:[#allocation3] sm:$0xff]
  %v271 = vld [vmem:[#allocation3 + $0x8] sm:$0xff]
  %v272 = vld [vmem:[#allocation3 + $0x10] sm:$0xff]
  %v273 = vld [vmem:[#allocation3 + $0x18] sm:$0xff]
  %v274 = vld [vmem:[#allocation3 + $0x20] sm:$0xff]
  %v275 = vld [vmem:[#allocation3 + $0x28] sm:$0xff]
  %v276 = vld [vmem:[#allocation3 + $0x30] sm:$0xff]
  %v277 = vld [vmem:[#allocation3 + $0x38] sm:$0xff]
  %v278 = vld [vmem:[#allocation3 + $0x40] sm:$0xff]
  %v279 = vld [vmem:[#allocation3 + $0x48] sm:$0xff]
  %v280 = vld [vmem:[#allocation3 + $0x50] sm:$0xff]
  %v281 = vld [vmem:[#allocation3 + $0x58] sm:$0xff]
  %v282 = vld [vmem:[#allocation3 + $0x60] sm:$0xf]
  %v283 = vld [vmem:[#allocation3 + $0x68] sm:$0xf]
  %v284 = vld [vmem:[#allocation3 + $0x70] sm:$0xf]
  %v285 = vld [vmem:[%s2] sm:$0xff]
  %287 = vset.pattern.permute.xlu0 0
  %288 = vperm.xlu0 %287, %v285
  %v289 = vpop.permute.xlu0 %288
  %vm291 = vcmask 293888
  %v293 = vsel %vm291, %v269, 0
  %vm295 = vcmask 1043456
  %v297 = vsel %vm295, %v282, 0
  %v300 = vsel %vm295, %v283, 0
  %v303 = vsel %vm295, %v284, 0
  %305 = vmatpush.msra.mxu0 0.0
  %306 = vmatpush.msra.mxu0 0.0
  %307 = vmatpush.msra.mxu0 0.0
  %308 = vmatpush.msra.mxu0 0.0
  %309 = vmatpush.msra.mxu0 0.0
  %310 = vmatpush.msra.mxu0 0.0
  %311 = vmatpush.msra.mxu0 0.0
  %312 = vmatpush.msra.mxu0 0.0
  %313 = vmatpush.msra.mxu0 0.0
  %314 = vmatpush.msra.mxu0 0.0
  %315 = vmatpush.msra.mxu0 0.0
  %316 = vmatpush.msra.mxu0 %v297
  %317 = vmatpush.msra.mxu0 %v279
  %318 = vmatpush.msra.mxu0 %v276
  %319 = vmatpush.msra.mxu0 %v273
  %320 = vmatpush.msra.mxu0 %v270
  %321 = vmatmul.f32.gmra.mxu0 %v293
  %v322 = vpop.f32.mrf.mxu0
  %v323 = vadd.f32 %v289, %v322
  %324 = vdwg.mxu0
  %325 = vmatpush.msra.mxu0 0.0
  %326 = vmatpush.msra.mxu0 0.0
  %327 = vmatpush.msra.mxu0 0.0
  %328 = vmatpush.msra.mxu0 0.0
  %329 = vmatpush.msra.mxu0 0.0
  %330 = vmatpush.msra.mxu0 0.0
  %331 = vmatpush.msra.mxu0 0.0
  %332 = vmatpush.msra.mxu0 0.0
  %333 = vmatpush.msra.mxu0 0.0
  %334 = vmatpush.msra.mxu0 0.0
  %335 = vmatpush.msra.mxu0 0.0
  %336 = vmatpush.msra.mxu0 %v300
  %337 = vmatpush.msra.mxu0 %v280
  %338 = vmatpush.msra.mxu0 %v277
  %339 = vmatpush.msra.mxu0 %v274
  %340 = vmatpush.msra.mxu0 %v271
  %341 = vmatmul.f32.gmra.mxu0 %v293
  %v342 = vpop.f32.mrf.mxu0
  %v343 = vadd.f32 %v289, %v342
  %344 = vdwg.mxu0
  %345 = vmatpush.msra.mxu0 0.0
  %346 = vmatpush.msra.mxu0 0.0
  %347 = vmatpush.msra.mxu0 0.0
  %348 = vmatpush.msra.mxu0 0.0
  %349 = vmatpush.msra.mxu0 0.0
  %350 = vmatpush.msra.mxu0 0.0
  %351 = vmatpush.msra.mxu0 0.0
  %352 = vmatpush.msra.mxu0 0.0
  %353 = vmatpush.msra.mxu0 0.0
  %354 = vmatpush.msra.mxu0 0.0
  %355 = vmatpush.msra.mxu0 0.0
  %356 = vmatpush.msra.mxu0 %v303
  %357 = vmatpush.msra.mxu0 %v281
  %358 = vmatpush.msra.mxu0 %v278
  %359 = vmatpush.msra.mxu0 %v275
  %360 = vmatpush.msra.mxu0 %v272
  %361 = vmatmul.f32.gmra.mxu0 %v293
  %v362 = vpop.f32.mrf.mxu0
  %v363 = vadd.f32 %v289, %v362
  %364 = vdwg.mxu0
  %v366 = vperm.slane %v25, 0
  %v367 = vperm.slane %v25, 1
  %v368 = vperm.slane %v25, 2
  %v372 = vmul.f32 %v323, %v366
  %v373 = vmul.f32 %v343, %v367
  %v374 = vmul.f32 %v363, %v368
  %v375 = vadd.f32 %v372, %v373
  %v376 = vsel %vm29, %v374, 0.0
  %v377 = vadd.f32 %v375, %v376
  %378 = vadd.xlane.f32.xlu0 %v377
  %v379 = vpop.xlane.xlu0 %378
  %v380 = vmul.f32 %v379, 0.00390625
  %v381 = vsub.f32 %v323, %v380
  %v382 = vsub.f32 %v343, %v380
  %v383 = vsub.f32 %v363, %v380
  %v384 = vmul.f32 %v381, %v366
  %v385 = vmul.f32 %v382, %v367
  %v386 = vmul.f32 %v383, %v368
  %v387 = vmul.f32 %v384, %v384
  %v388 = vmul.f32 %v385, %v385
  %v389 = vmul.f32 %v386, %v386
  %v390 = vadd.f32 %v387, %v388
  %v391 = vsel %vm29, %v389, 0.0
  %v392 = vadd.f32 %v390, %v391
  %393 = vadd.xlane.f32.xlu0 %v392
  %v394 = vpop.xlane.xlu0 %393
  %v395 = vmul.f32 %v394, 0.00390625
  %v396 = vadd.f32 %v395, 1e-05
  %v397 = vrsqrt.pop %v396
  %v398 = vmul.f32 %v397, %v396
  %v399 = vmul.f32 %v398, %v397
  %v400 = vmul.f32 0.5, %v399
  %v401 = vsub.f32 1.5, %v400
  %v402 = vmul.f32 %v397, %v401
  %vm403 = vweird.f32 %v396
  %vm404 = vweird.f32 %v397
  %vm405 = vmor %vm403, %vm404
  %v406 = vsel %vm405, %v397, %v402
  %v407 = vmul.f32 %v381, %v406
  %v408 = vmul.f32 %v382, %v406
  %v409 = vmul.f32 %v383, %v406
  %v410 = vmul.f32 %v407, 0.2
  %v411 = vmul.f32 %v408, 0.2
  %v412 = vmul.f32 %v409, 0.2
  %v413 = vmax.f32 %v407, %v410
  %v414 = vmax.f32 %v408, %v411
  %v415 = vmax.f32 %v409, %v412
  %v416 = vmul.f32 %v413, %v366
  %v417 = vmul.f32 %v414, %v367
  %v418 = vmul.f32 %v415, %v368
  %419 = vst [vmem:[#allocation2 + $0x8] sm:$0xff] %v416
  %420 = vst [vmem:[#allocation2 + $0x10] sm:$0xff] %v417
  %421 = vst.msk [vmem:[#allocation2 + $0x18] sm:$0xff] %vm29, %v418
  %v422 = vld [vmem:[#allocation2] sm:$0xff]
  %v423 = vld [vmem:[#allocation2 + $0x8] sm:$0xff]
  %v424 = vld [vmem:[#allocation2 + $0x10] sm:$0xff]
  %v425 = vld [vmem:[#allocation2 + $0x18] sm:$0xff]
  %430 = vrot.lane.b32.xlu0 %v422, 19
  %v431 = vpop.permute.xlu0 %430
  %432 = vrot.lane.b32.xlu0 %v423, 19
  %v433 = vpop.permute.xlu0 %432
  %434 = vrot.lane.b32.xlu0 %v424, 19
  %v435 = vpop.permute.xlu0 %434
  %436 = vrot.lane.b32.xlu0 %v425, 19
  %v437 = vpop.permute.xlu0 %436
  %v438 = vsel %vm50, %v431, %v433
  %v439 = vsel %vm50, %v433, %v435
  %v440 = vsel %vm50, %v435, %v437
  %444 = vst [vmem:[#allocation4] sm:$0xff] %v438
  %445 = vst [vmem:[#allocation4 + $0x8] sm:$0xff] %v439
  %446 = vst.msk [vmem:[#allocation4 + $0x10] sm:$0xff] %vm29, %v440
  %v447 = vld [vmem:[#allocation2] sm:$0xff]
  %v448 = vld [vmem:[#allocation2 + $0x8] sm:$0xff]
  %v449 = vld [vmem:[#allocation2 + $0x10] sm:$0xff]
  %v450 = vld [vmem:[#allocation2 + $0x18] sm:$0xff]
  %455 = vrot.lane.b32.xlu0 %v447, 18
  %v456 = vpop.permute.xlu0 %455
  %457 = vrot.lane.b32.xlu0 %v448, 18
  %v458 = vpop.permute.xlu0 %457
  %459 = vrot.lane.b32.xlu0 %v449, 18
  %v460 = vpop.permute.xlu0 %459
  %461 = vrot.lane.b32.xlu0 %v450, 18
  %v462 = vpop.permute.xlu0 %461
  %v463 = vsel %vm81, %v456, %v458
  %v464 = vsel %vm81, %v458, %v460
  %v465 = vsel %vm81, %v460, %v462
  %469 = vst [vmem:[#allocation4 + $0x18] sm:$0xff] %v463
  %470 = vst [vmem:[#allocation4 + $0x20] sm:$0xff] %v464
  %471 = vst.msk [vmem:[#allocation4 + $0x28] sm:$0xff] %vm29, %v465
  %v472 = vld [vmem:[#allocation2] sm:$0xff]
  %v473 = vld [vmem:[#allocation2 + $0x8] sm:$0xff]
  %v474 = vld [vmem:[#allocation2 + $0x10] sm:$0xff]
  %v475 = vld [vmem:[#allocation2 + $0x18] sm:$0xff]
  %480 = vrot.lane.b32.xlu0 %v472, 17
  %v481 = vpop.permute.xlu0 %480
  %482 = vrot.lane.b32.xlu0 %v473, 17
  %v483 = vpop.permute.xlu0 %482
  %484 = vrot.lane.b32.xlu0 %v474, 17
  %v485 = vpop.permute.xlu0 %484
  %486 = vrot.lane.b32.xlu0 %v475, 17
  %v487 = vpop.permute.xlu0 %486
  %v488 = vsel %vm111, %v481, %v483
  %v489 = vsel %vm111, %v483, %v485
  %v490 = vsel %vm111, %v485, %v487
  %494 = vst [vmem:[#allocation4 + $0x30] sm:$0xff] %v488
  %495 = vst [vmem:[#allocation4 + $0x38] sm:$0xff] %v489
  %496 = vst.msk [vmem:[#allocation4 + $0x40] sm:$0xff] %vm29, %v490
  %v497 = vld [vmem:[#allocation2] sm:$0xff]
  %v498 = vld [vmem:[#allocation2 + $0x8] sm:$0xff]
  %v499 = vld [vmem:[#allocation2 + $0x10] sm:$0xff]
  %v500 = vld [vmem:[#allocation2 + $0x18] sm:$0xff]
  %505 = vrot.lane.b32.xlu0 %v497, 1
  %v506 = vpop.permute.xlu0 %505
  %507 = vrot.lane.b32.xlu0 %v498, 1
  %v508 = vpop.permute.xlu0 %507
  %509 = vrot.lane.b32.xlu0 %v499, 1
  %v510 = vpop.permute.xlu0 %509
  %511 = vrot.lane.b32.xlu0 %v500, 1
  %v512 = vpop.permute.xlu0 %511
  %v513 = vsel %vm141, %v506, %v508
  %v514 = vsel %vm141, %v508, %v510
  %v515 = vsel %vm141, %v510, %v512
  %519 = vst [vmem:[#allocation4 + $0x48] sm:$0xff] %v513
  %520 = vst [vmem:[#allocation4 + $0x50] sm:$0xff] %v514
  %521 = vst.msk [vmem:[#allocation4 + $0x58] sm:$0xff] %vm29, %v515
  %v522 = vld [vmem:[#allocation2 + $0x8] sm:$0xff]
  %v523 = vld [vmem:[#allocation2 + $0x10] sm:$0xff]
  %v524 = vld [vmem:[#allocation2 + $0x18] sm:$0xff]
  %525 = vst [vmem:[#allocation4 + $0x60] sm:$0xff] %v522
  %526 = vst [vmem:[#allocation4 + $0x68] sm:$0xff] %v523
  %527 = vst.msk [vmem:[#allocation4 + $0x70] sm:$0xff] %vm29, %v524
  %v528 = vld [vmem:[#allocation2 + $0x8] sm:$0xff]
  %v529 = vld [vmem:[#allocation2 + $0x10] sm:$0xff]
  %v530 = vld [vmem:[#allocation2 + $0x18] sm:$0xff]
  %534 = vrot.lane.b32.xlu0 %v528, 127
  %v535 = vpop.permute.xlu0 %534
  %536 = vrot.lane.b32.xlu0 %v529, 127
  %v537 = vpop.permute.xlu0 %536
  %538 = vrot.lane.b32.xlu0 %v530, 127
  %v539 = vpop.permute.xlu0 %538
  %v540 = vsel %vm184, %v535, %v537
  %v541 = vsel %vm184, %v537, %v539
  %545 = vst [vmem:[#allocation4 + $0x78] sm:$0xff] %v540
  %546 = vst [vmem:[#allocation4 + $0x80] sm:$0xff] %v541
  %547 = vst.msk [vmem:[#allocation4 + $0x88] sm:$0xff] %vm29, %v539
  %v548 = vld [vmem:[#allocation2 + $0x8] sm:$0xff]
  %v549 = vld [vmem:[#allocation2 + $0x10] sm:$0xff]
  %v550 = vld [vmem:[#allocation2 + $0x18] sm:$0xff]
  %554 = vrot.lane.b32.xlu0 %v548, 111
  %v555 = vpop.permute.xlu0 %554
  %556 = vrot.lane.b32.xlu0 %v549, 111
  %v557 = vpop.permute.xlu0 %556
  %558 = vrot.lane.b32.xlu0 %v550, 111
  %v559 = vpop.permute.xlu0 %558
  %v560 = vsel %vm209, %v555, %v557
  %v561 = vsel %vm209, %v557, %v559
  %565 = vst [vmem:[#allocation4 + $0x90] sm:$0xff] %v560
  %566 = vst [vmem:[#allocation4 + $0x98] sm:$0xff] %v561
  %567 = vst.msk [vmem:[#allocation4 + $0xa0] sm:$0xff] %vm29, %v559
  %v568 = vld [vmem:[#allocation2 + $0x8] sm:$0xff]
  %v569 = vld [vmem:[#allocation2 + $0x10] sm:$0xff]
  %v570 = vld [vmem:[#allocation2 + $0x18] sm:$0xff]
  %574 = vrot.lane.b32.xlu0 %v568, 110
  %v575 = vpop.permute.xlu0 %574
  %576 = vrot.lane.b32.xlu0 %v569, 110
  %v577 = vpop.permute.xlu0 %576
  %578 = vrot.lane.b32.xlu0 %v570, 110
  %v579 = vpop.permute.xlu0 %578
  %v580 = vsel %vm235, %v575, %v577
  %v581 = vsel %vm235, %v577, %v579
  %585 = vst [vmem:[#allocation4 + $0xa8] sm:$0xff] %v580
  %586 = vst [vmem:[#allocation4 + $0xb0] sm:$0xff] %v581
  %587 = vst.msk [vmem:[#allocation4 + $0xb8] sm:$0xff] %vm29, %v579
  %v588 = vld [vmem:[#allocation2 + $0x8] sm:$0xff]
  %v589 = vld [vmem:[#allocation2 + $0x10] sm:$0xff]
  %v590 = vld [vmem:[#allocation2 + $0x18] sm:$0xff]
  %594 = vrot.lane.b32.xlu0 %v588, 109
  %v595 = vpop.permute.xlu0 %594
  %596 = vrot.lane.b32.xlu0 %v589, 109
  %v597 = vpop.permute.xlu0 %596
  %598 = vrot.lane.b32.xlu0 %v590, 109
  %v599 = vpop.permute.xlu0 %598
  %v600 = vsel %vm260, %v595, %v597
  %v601 = vsel %vm260, %v597, %v599
  %605 = vst [vmem:[#allocation4 + $0xc0] sm:$0xff] %v600
  %606 = vst [vmem:[#allocation4 + $0xc8] sm:$0xff] %v601
  %607 = vst.msk [vmem:[#allocation4 + $0xd0] sm:$0xff] %vm29, %v599
  %v608 = vld [vmem:[%s3] sm:$0xff]
  %v609 = vld [vmem:[#allocation4] sm:$0xff]
  %v610 = vld [vmem:[#allocation4 + $0x8] sm:$0xff]
  %v611 = vld [vmem:[#allocation4 + $0x10] sm:$0xff]
  %v612 = vld [vmem:[#allocation4 + $0x18] sm:$0xff]
  %v613 = vld [vmem:[#allocation4 + $0x20] sm:$0xff]
  %v614 = vld [vmem:[#allocation4 + $0x28] sm:$0xff]
  %v615 = vld [vmem:[#allocation4 + $0x30] sm:$0xff]
  %v616 = vld [vmem:[#allocation4 + $0x38] sm:$0xff]
  %v617 = vld [vmem:[#allocation4 + $0x40] sm:$0xff]
  %v618 = vld [vmem:[#allocation4 + $0x48] sm:$0xff]
  %v619 = vld [vmem:[#allocation4 + $0x50] sm:$0xff]
  %v620 = vld [vmem:[#allocation4 + $0x58] sm:$0xff]
  %v621 = vld [vmem:[#allocation4 + $0x60] sm:$0xff]
  %v622 = vld [vmem:[#allocation4 + $0x68] sm:$0xff]
  %v623 = vld [vmem:[#allocation4 + $0x70] sm:$0xff]
  %v624 = vld [vmem:[#allocation4 + $0x78] sm:$0xff]
  %v625 = vld [vmem:[#allocation4 + $0x80] sm:$0xff]
  %v626 = vld [vmem:[#allocation4 + $0x88] sm:$0xff]
  %v627 = vld [vmem:[#allocation4 + $0x90] sm:$0xff]
  %v628 = vld [vmem:[#allocation4 + $0x98] sm:$0xff]
  %v629 = vld [vmem:[#allocation4 + $0xa0] sm:$0xff]
  %v630 = vld [vmem:[#allocation4 + $0xa8] sm:$0xff]
  %v631 = vld [vmem:[#allocation4 + $0xb0] sm:$0xff]
  %v632 = vld [vmem:[#allocation4 + $0xb8] sm:$0xff]
  %v633 = vld [vmem:[#allocation4 + $0xc0] sm:$0xff]
  %v634 = vld [vmem:[#allocation4 + $0xc8] sm:$0xff]
  %v635 = vld [vmem:[#allocation4 + $0xd0] sm:$0xff]
  %v636 = vld [vmem:[%s4] sm:$0xff]
  %638 = vset.pattern.permute.xlu0 0
  %639 = vperm.xlu0 %638, %v636
  %v640 = vpop.permute.xlu0 %639
  %vm642 = vcmask 588800
  %v644 = vsel %vm642, %v608, 0
  %646 = vmatpush.msra.mxu0 0.0
  %647 = vmatpush.msra.mxu0 0.0
  %648 = vmatpush.msra.mxu0 0.0
  %649 = vmatpush.msra.mxu0 0.0
  %650 = vmatpush.msra.mxu0 0.0
  %651 = vmatpush.msra.mxu0 0.0
  %652 = vmatpush.msra.mxu0 0.0
  %653 = vmatpush.msra.mxu0 %v633
  %654 = vmatpush.msra.mxu0 %v630
  %655 = vmatpush.msra.mxu0 %v627
  %656 = vmatpush.msra.mxu0 %v624
  %657 = vmatpush.msra.mxu0 %v621
  %658 = vmatpush.msra.mxu0 %v618
  %659 = vmatpush.msra.mxu0 %v615
  %660 = vmatpush.msra.mxu0 %v612
  %661 = vmatpush.msra.mxu0 %v609
  %662 = vmatmul.f32.gmra.mxu0 %v644
  %v663 = vpop.f32.mrf.mxu0
  %v664 = vadd.f32 %v640, %v663
  %665 = vdwg.mxu0
  %666 = vmatpush.msra.mxu0 0.0
  %667 = vmatpush.msra.mxu0 0.0
  %668 = vmatpush.msra.mxu0 0.0
  %669 = vmatpush.msra.mxu0 0.0
  %670 = vmatpush.msra.mxu0 0.0
  %671 = vmatpush.msra.mxu0 0.0
  %672 = vmatpush.msra.mxu0 0.0
  %673 = vmatpush.msra.mxu0 %v634
  %674 = vmatpush.msra.mxu0 %v631
  %675 = vmatpush.msra.mxu0 %v628
  %676 = vmatpush.msra.mxu0 %v625
  %677 = vmatpush.msra.mxu0 %v622
  %678 = vmatpush.msra.mxu0 %v619
  %679 = vmatpush.msra.mxu0 %v616
  %680 = vmatpush.msra.mxu0 %v613
  %681 = vmatpush.msra.mxu0 %v610
  %682 = vmatmul.f32.gmra.mxu0 %v644
  %v683 = vpop.f32.mrf.mxu0
  %v684 = vadd.f32 %v640, %v683
  %685 = vdwg.mxu0
  %686 = vmatpush.msra.mxu0 0.0
  %687 = vmatpush.msra.mxu0 0.0
  %688 = vmatpush.msra.mxu0 0.0
  %689 = vmatpush.msra.mxu0 0.0
  %690 = vmatpush.msra.mxu0 0.0
  %691 = vmatpush.msra.mxu0 0.0
  %692 = vmatpush.msra.mxu0 0.0
  %693 = vmatpush.msra.mxu0 %v635
  %694 = vmatpush.msra.mxu0 %v632
  %695 = vmatpush.msra.mxu0 %v629
  %696 = vmatpush.msra.mxu0 %v626
  %697 = vmatpush.msra.mxu0 %v623
  %698 = vmatpush.msra.mxu0 %v620
  %699 = vmatpush.msra.mxu0 %v617
  %700 = vmatpush.msra.mxu0 %v614
  %701 = vmatpush.msra.mxu0 %v611
  %702 = vmatmul.f32.gmra.mxu0 %v644
  %v703 = vpop.f32.mrf.mxu0
  %v704 = vadd.f32 %v640, %v703
  %705 = vdwg.mxu0
  %v706 = vmul.f32 %v664, %v366
  %v707 = vmul.f32 %v684, %v367
  %v708 = vmul.f32 %v704, %v368
  %v709 = vadd.f32 %v706, %v707
  %v710 = vsel %vm29, %v708, 0.0
  %v711 = vadd.f32 %v709, %v710
  %712 = vadd.xlane.f32.xlu0 %v711
  %v713 = vpop.xlane.xlu0 %712
  %v714 = vmul.f32 %v713, 0.00390625
  %v715 = vsub.f32 %v664, %v714
  %v716 = vsub.f32 %v684, %v714
  %v717 = vsub.f32 %v704, %v714
  %v718 = vmul.f32 %v715, %v366
  %v719 = vmul.f32 %v716, %v367
  %v720 = vmul.f32 %v717, %v368
  %v721 = vmul.f32 %v718, %v718
  %v722 = vmul.f32 %v719, %v719
  %v723 = vmul.f32 %v720, %v720
  %v724 = vadd.f32 %v721, %v722
  %v725 = vsel %vm29, %v723, 0.0
  %v726 = vadd.f32 %v724, %v725
  %727 = vadd.xlane.f32.xlu0 %v726
  %v728 = vpop.xlane.xlu0 %727
  %v729 = vmul.f32 %v728, 0.00390625
  %v730 = vadd.f32 %v729, 1e-05
  %v731 = vrsqrt.pop %v730
  %v732 = vmul.f32 %v731, %v730
  %v733 = vmul.f32 %v732, %v731
  %v734 = vmul.f32 0.5, %v733
  %v735 = vsub.f32 1.5, %v734
  %v736 = vmul.f32 %v731, %v735
  %vm737 = vweird.f32 %v730
  %vm738 = vweird.f32 %v731
  %vm739 = vmor %vm737, %vm738
  %v740 = vsel %vm739, %v731, %v736
  %v741 = vmul.f32 %v715, %v740
  %v742 = vmul.f32 %v716, %v740
  %v743 = vmul.f32 %v717, %v740
  %v744 = vmul.f32 %v741, 0.2
  %v745 = vmul.f32 %v742, 0.2
  %v746 = vmul.f32 %v743, 0.2
  %v747 = vmax.f32 %v741, %v744
  %v748 = vmax.f32 %v742, %v745
  %v749 = vmax.f32 %v743, %v746
  %750 = vst [vmem:[%s6] sm:$0xff] %v747
  %751 = vst [vmem:[%s6 + $0x8] sm:$0xff] %v748
  %752 = vst.msk [vmem:[%s6 + $0x10] sm:$0xff] %vm29, %v749
  %753 = vst [vmem:[#allocation2 + $0x8] sm:$0xff] %v747
  %754 = vst [vmem:[#allocation2 + $0x10] sm:$0xff] %v748
  %755 = vst.msk [vmem:[#allocation2 + $0x18] sm:$0xff] %vm29, %v749
  %v756 = vld [vmem:[#allocation2 + $0x8] sm:$0xff]
  %v757 = vld [vmem:[#allocation2 + $0x10] sm:$0xff]
  %v758 = vld [vmem:[#allocation2 + $0x18] sm:$0xff]
  %762 = vrot.lane.b32.xlu0 %v756, 127
  %v763 = vpop.permute.xlu0 %762
  %764 = vrot.lane.b32.xlu0 %v757, 127
  %v765 = vpop.permute.xlu0 %764
  %766 = vrot.lane.b32.xlu0 %v758, 127
  %v767 = vpop.permute.xlu0 %766
  %v768 = vsel %vm184, %v763, %v765
  %v769 = vsel %vm184, %v765, %v767
  %v773 = vmax.f32 %v747, %v768
  %v774 = vmax.f32 %v748, %v769
  %v775 = vmax.f32 %v749, %v767
  %v776 = vmax.f32 %v756, %v768
  %v777 = vmax.f32 %v757, %v769
  %v778 = vmax.f32 %v758, %v767
  %782 = vrot.lane.b32.xlu0 %v776, 110
  %v783 = vpop.permute.xlu0 %782
  %784 = vrot.lane.b32.xlu0 %v777, 110
  %v785 = vpop.permute.xlu0 %784
  %786 = vrot.lane.b32.xlu0 %v778, 110
  %v787 = vpop.permute.xlu0 %786
  %v788 = vsel %vm235, %v783, %v785
  %v789 = vsel %vm235, %v785, %v787
  %v793 = vmax.f32 %v773, %v788
  %v794 = vmax.f32 %v774, %v789
  %v795 = vmax.f32 %v775, %v787
  %796 = vst [vmem:[%s7] sm:$0xff] %v793
  %797 = vst [vmem:[%s7 + $0x8] sm:$0xff] %v794
  %798 = vst.msk [vmem:[%s7 + $0x10] sm:$0xff] %vm29, %v795
  %s799 = scalar_lea.vmem %s0, 20
  %v800 = vld [vmem:[%s799] sm:$0xff]
  %v801 = vld [vmem:[%s799 + $0x8] sm:$0xff]
  %804 = vst [vmem:[#allocation1] ss:$2 sm:$0xff] %v800
  %s805 = scalar_lea.vmem [#allocation1], 16
  %806 = vst [vmem:[%s805] ss:$2 sm:$0xff] %v801
  %v807 = vld.sshfl [vmem:[#allocation1] sm:$0xff pattern:$0x75316420]
  %v808 = vld.sshfl [vmem:[#allocation1 + $0x8] sm:$0xff pattern:$0x75316420]
  %v809 = vld.sshfl [vmem:[#allocation1 + $0x10] sm:$0xff pattern:$0x75316420]
  %v810 = vld.sshfl [vmem:[#allocation1 + $0x18] sm:$0xff pattern:$0x75316420]
  %811 = vrot.lane.b32.xlu0 %v807, 19
  %v812 = vpop.permute.xlu0 %811
  %813 = vrot.lane.b32.xlu0 %v808, 19
  %v814 = vpop.permute.xlu0 %813
  %815 = vrot.lane.b32.xlu0 %v809, 19
  %v816 = vpop.permute.xlu0 %815
  %817 = vrot.lane.b32.xlu0 %v810, 19
  %v818 = vpop.permute.xlu0 %817
  %v819 = vsel %vm50, %v812, %v814
  %v820 = vsel %vm50, %v814, %v816
  %v821 = vsel %vm50, %v816, %v818
  %825 = vst [vmem:[#allocation3] sm:$0xf] %v819
  %826 = vst [vmem:[#allocation3 + $0x8] sm:$0xf] %v820
  %827 = vst.msk [vmem:[#allocation3 + $0x10] sm:$0xf] %vm59, %v821
  %v828 = vld [vmem:[%s799] sm:$0xff]
  %v829 = vld [vmem:[%s799 + $0x8] sm:$0xff]
  %s832 = scalar_lea.vmem [#allocation1], 1
  %833 = vst [vmem:[%s832] ss:$2 sm:$0xff] %v828
  %s834 = scalar_lea.vmem [#allocation1], 17
  %835 = vst [vmem:[%s834] ss:$2 sm:$0xff] %v829
  %v836 = vld.sshfl [vmem:[#allocation1] sm:$0xff pattern:$0x75316420]
  %v837 = vld.sshfl [vmem:[#allocation1 + $0x8] sm:$0xff pattern:$0x75316420]
  %v838 = vld.sshfl [vmem:[#allocation1 + $0x10] sm:$0xff pattern:$0x75316420]
  %v839 = vld.sshfl [vmem:[#allocation1 + $0x18] sm:$0xff pattern:$0x75316420]
  %840 = vrot.lane.b32.xlu0 %v836, 18
  %v841 = vpop.permute.xlu0 %840
  %842 = vrot.lane.b32.xlu0 %v837, 18
  %v843 = vpop.permute.xlu0 %842
  %844 = vrot.lane.b32.xlu0 %v838, 18
  %v845 = vpop.permute.xlu0 %844
  %846 = vrot.lane.b32.xlu0 %v839, 18
  %v847 = vpop.permute.xlu0 %846
  %v848 = vsel %vm81, %v841, %v843
  %v849 = vsel %vm81, %v843, %v845
  %v850 = vsel %vm81, %v845, %v847
  %854 = vst [vmem:[#allocation3] sm:$0xf0] %v848
  %855 = vst [vmem:[#allocation3 + $0x8] sm:$0xf0] %v849
  %856 = vst.msk [vmem:[#allocation3 + $0x10] sm:$0xf0] %vm90, %v850
  %v857 = vld [vmem:[%s799] sm:$0xff]
  %v858 = vld [vmem:[%s799 + $0x8] sm:$0xff]
  %861 = vst [vmem:[#allocation1] ss:$2 sm:$0xff] %v857
  %s862 = scalar_lea.vmem [#allocation1], 16
  %863 = vst [vmem:[%s862] ss:$2 sm:$0xff] %v858
  %v864 = vld.sshfl [vmem:[#allocation1] sm:$0xff pattern:$0x75316420]
  %v865 = vld.sshfl [vmem:[#allocation1 + $0x8] sm:$0xff pattern:$0x75316420]
  %v866 = vld.sshfl [vmem:[#allocation1 + $0x10] sm:$0xff pattern:$0x75316420]
  %v867 = vld.sshfl [vmem:[#allocation1 + $0x18] sm:$0xff pattern:$0x75316420]
  %868 = vrot.lane.b32.xlu0 %v864, 17
  %v869 = vpop.permute.xlu0 %868
  %870 = vrot.lane.b32.xlu0 %v865, 17
  %v871 = vpop.permute.xlu0 %870
  %872 = vrot.lane.b32.xlu0 %v866, 17
  %v873 = vpop.permute.xlu0 %872
  %874 = vrot.lane.b32.xlu0 %v867, 17
  %v875 = vpop.permute.xlu0 %874
  %v876 = vsel %vm111, %v869, %v871
  %v877 = vsel %vm111, %v871, %v873
  %v878 = vsel %vm111, %v873, %v875
  %882 = vst [vmem:[#allocation3 + $0x18] sm:$0xf] %v876
  %883 = vst [vmem:[#allocation3 + $0x20] sm:$0xf] %v877
  %884 = vst.msk [vmem:[#allocation3 + $0x28] sm:$0xf] %vm59, %v878
  %v885 = vld [vmem:[%s799] sm:$0xff]
  %v886 = vld [vmem:[%s799 + $0x8] sm:$0xff]
  %s889 = scalar_lea.vmem [#allocation1], 1
  %890 = vst [vmem:[%s889] ss:$2 sm:$0xff] %v885
  %s891 = scalar_lea.vmem [#allocation1], 17
  %892 = vst [vmem:[%s891] ss:$2 sm:$0xff] %v886
  %v893 = vld.sshfl [vmem:[#allocation1] sm:$0xff pattern:$0x75316420]
  %v894 = vld.sshfl [vmem:[#allocation1 + $0x8] sm:$0xff pattern:$0x75316420]
  %v895 = vld.sshfl [vmem:[#allocation1 + $0x10] sm:$0xff pattern:$0x75316420]
  %v896 = vld.sshfl [vmem:[#allocation1 + $0x18] sm:$0xff pattern:$0x75316420]
  %897 = vrot.lane.b32.xlu0 %v893, 1
  %v898 = vpop.permute.xlu0 %897
  %899 = vrot.lane.b32.xlu0 %v894, 1
  %v900 = vpop.permute.xlu0 %899
  %901 = vrot.lane.b32.xlu0 %v895, 1
  %v902 = vpop.permute.xlu0 %901
  %903 = vrot.lane.b32.xlu0 %v896, 1
  %v904 = vpop.permute.xlu0 %903
  %v905 = vsel %vm141, %v898, %v900
  %v906 = vsel %vm141, %v900, %v902
  %v907 = vsel %vm141, %v902, %v904
  %911 = vst [vmem:[#allocation3 + $0x18] sm:$0xf0] %v905
  %912 = vst [vmem:[#allocation3 + $0x20] sm:$0xf0] %v906
  %913 = vst.msk [vmem:[#allocation3 + $0x28] sm:$0xf0] %vm90, %v907
  %v914 = vld [vmem:[%s799 + $0x4] sm:$0xff]
  %v915 = vld [vmem:[%s799 + $0xc] sm:$0xf]
  %918 = vst [vmem:[#allocation1] ss:$2 sm:$0xff] %v914
  %s919 = scalar_lea.vmem [#allocation1], 16
  %920 = vst [vmem:[%s919] ss:$2 sm:$0xff] %v915
  %v921 = vld.sshfl [vmem:[#allocation1] sm:$0xff pattern:$0x75316420]
  %v922 = vld.sshfl [vmem:[#allocation1 + $0x8] sm:$0xff pattern:$0x75316420]
  %v923 = vld.sshfl [vmem:[#allocation1 + $0x10] sm:$0xff pattern:$0x75316420]
  %927 = vst [vmem:[#allocation3 + $0x30] sm:$0xf] %v921
  %928 = vst [vmem:[#allocation3 + $0x38] sm:$0xf] %v922
  %929 = vst.msk [vmem:[#allocation3 + $0x40] sm:$0xf] %vm59, %v923
  %v930 = vld [vmem:[%s799 + $0x4] sm:$0xff]
  %v931 = vld [vmem:[%s799 + $0xc] sm:$0xf]
  %s934 = scalar_lea.vmem [#allocation1], 1
  %935 = vst [vmem:[%s934] ss:$2 sm:$0xff] %v930
  %s936 = scalar_lea.vmem [#allocation1], 17
  %937 = vst [vmem:[%s936] ss:$2 sm:$0xff] %v931
  %v938 = vld.sshfl [vmem:[#allocation1] sm:$0xff pattern:$0x75316420]
  %v939 = vld.sshfl [vmem:[#allocation1 + $0x8] sm:$0xff pattern:$0x75316420]
  %v940 = vld.sshfl [vmem:[#allocation1 + $0x10] sm:$0xff pattern:$0x75316420]
  %941 = vrot.lane.b32.xlu0 %v938, 127
  %v942 = vpop.permute.xlu0 %941
  %943 = vrot.lane.b32.xlu0 %v939, 127
  %v944 = vpop.permute.xlu0 %943
  %945 = vrot.lane.b32.xlu0 %v940, 127
  %v946 = vpop.permute.xlu0 %945
  %v947 = vsel %vm184, %v942, %v944
  %v948 = vsel %vm184, %v944, %v946
  %952 = vst [vmem:[#allocation3 + $0x30] sm:$0xf0] %v947
  %953 = vst [vmem:[#allocation3 + $0x38] sm:$0xf0] %v948
  %954 = vst.msk [vmem:[#allocation3 + $0x40] sm:$0xf0] %vm90, %v946
  %v955 = vld [vmem:[%s799 + $0x4] sm:$0xff]
  %v956 = vld [vmem:[%s799 + $0xc] sm:$0xf]
  %959 = vst [vmem:[#allocation1] ss:$2 sm:$0xff] %v955
  %s960 = scalar_lea.vmem [#allocation1], 16
  %961 = vst [vmem:[%s960] ss:$2 sm:$0xff] %v956
  %v962 = vld.sshfl [vmem:[#allocation1] sm:$0xff pattern:$0x75316420]
  %v963 = vld.sshfl [vmem:[#allocation1 + $0x8] sm:$0xff pattern:$0x75316420]
  %v964 = vld.sshfl [vmem:[#allocation1 + $0x10] sm:$0xff pattern:$0x75316420]
  %965 = vrot.lane.b32.xlu0 %v962, 111
  %v966 = vpop.permute.xlu0 %965
  %967 = vrot.lane.b32.xlu0 %v963, 111
  %v968 = vpop.permute.xlu0 %967
  %969 = vrot.lane.b32.xlu0 %v964, 111
  %v970 = vpop.permute.xlu0 %969
  %v971 = vsel %vm209, %v966, %v968
  %v972 = vsel %vm209, %v968, %v970
  %976 = vst [vmem:[#allocation3 + $0x48] sm:$0xf] %v971
  %977 = vst [vmem:[#allocation3 + $0x50] sm:$0xf] %v972
  %978 = vst.msk [vmem:[#allocation3 + $0x58] sm:$0xf] %vm59, %v970
  %v979 = vld [vmem:[%s799 + $0x4] sm:$0xff]
  %v980 = vld [vmem:[%s799 + $0xc] sm:$0xf]
  %s983 = scalar_lea.vmem [#allocation1], 1
  %984 = vst [vmem:[%s983] ss:$2 sm:$0xff] %v979
  %s985 = scalar_lea.vmem [#allocation1], 17
  %986 = vst [vmem:[%s985] ss:$2 sm:$0xff] %v980
  %v987 = vld.sshfl [vmem:[#allocation1] sm:$0xff pattern:$0x75316420]
  %v988 = vld.sshfl [vmem:[#allocation1 + $0x8] sm:$0xff pattern:$0x75316420]
  %v989 = vld.sshfl [vmem:[#allocation1 + $0x10] sm:$0xff pattern:$0x75316420]
  %990 = vrot.lane.b32.xlu0 %v987, 110
  %v991 = vpop.permute.xlu0 %990
  %992 = vrot.lane.b32.xlu0 %v988, 110
  %v993 = vpop.permute.xlu0 %992
  %994 = vrot.lane.b32.xlu0 %v989, 110
  %v995 = vpop.permute.xlu0 %994
  %v996 = vsel %vm235, %v991, %v993
  %v997 = vsel %vm235, %v993, %v995
  %1001 = vst [vmem:[#allocation3 + $0x48] sm:$0xf0] %v996
  %1002 = vst [vmem:[#allocation3 + $0x50] sm:$0xf0] %v997
  %1003 = vst.msk [vmem:[#allocation3 + $0x58] sm:$0xf0] %vm90, %v995
  %v1004 = vld [vmem:[%s799 + $0x4] sm:$0xff]
  %v1005 = vld [vmem:[%s799 + $0xc] sm:$0xf]
  %1008 = vst [vmem:[#allocation1] ss:$2 sm:$0xff] %v1004
  %s1009 = scalar_lea.vmem [#allocation1], 16
  %1010 = vst [vmem:[%s1009] ss:$2 sm:$0xff] %v1005
  %v1011 = vld.sshfl [vmem:[#allocation1] sm:$0xff pattern:$0x75316420]
  %v1012 = vld.sshfl [vmem:[#allocation1 + $0x8] sm:$0xff pattern:$0x75316420]
  %v1013 = vld.sshfl [vmem:[#allocation1 + $0x10] sm:$0xff pattern:$0x75316420]
  %1014 = vrot.lane.b32.xlu0 %v1011, 109
  %v1015 = vpop.permute.xlu0 %1014
  %1016 = vrot.lane.b32.xlu0 %v1012, 109
  %v1017 = vpop.permute.xlu0 %1016
  %1018 = vrot.lane.b32.xlu0 %v1013, 109
  %v1019 = vpop.permute.xlu0 %1018
  %v1020 = vsel %vm260, %v1015, %v1017
  %v1021 = vsel %vm260, %v1017, %v1019
  %1025 = vst [vmem:[#allocation3 + $0x60] sm:$0xf] %v1020
  %1026 = vst [vmem:[#allocation3 + $0x68] sm:$0xf] %v1021
  %1027 = vst.msk [vmem:[#allocation3 + $0x70] sm:$0xf] %vm59, %v1019
  %v1028 = vld [vmem:[%s1] sm:$0xff]
  %v1029 = vld [vmem:[#allocation3] sm:$0xff]
  %v1030 = vld [vmem:[#allocation3 + $0x8] sm:$0xff]
  %v1031 = vld [vmem:[#allocation3 + $0x10] sm:$0xff]
  %v1032 = vld [vmem:[#allocation3 + $0x18] sm:$0xff]
  %v1033 = vld [vmem:[#allocation3 + $0x20] sm:$0xff]
  %v1034 = vld [vmem:[#allocation3 + $0x28] sm:$0xff]
  %v1035 = vld [vmem:[#allocation3 + $0x30] sm:$0xff]
  %v1036 = vld [vmem:[#allocation3 + $0x38] sm:$0xff]
  %v1037 = vld [vmem:[#allocation3 + $0x40] sm:$0xff]
  %v1038 = vld [vmem:[#allocation3 + $0x48] sm:$0xff]
  %v1039 = vld [vmem:[#allocation3 + $0x50] sm:$0xff]
  %v1040 = vld [vmem:[#allocation3 + $0x58] sm:$0xff]
  %v1041 = vld [vmem:[#allocation3 + $0x60] sm:$0xf]
  %v1042 = vld [vmem:[#allocation3 + $0x68] sm:$0xf]
  %v1043 = vld [vmem:[#allocation3 + $0x70] sm:$0xf]
  %v1044 = vld [vmem:[%s2] sm:$0xff]
  %1046 = vset.pattern.permute.xlu0 0
  %1047 = vperm.xlu0 %1046, %v1044
  %v1048 = vpop.permute.xlu0 %1047
  %v1051 = vsel %vm291, %v1028, 0
  %v1054 = vsel %vm295, %v1041, 0
  %v1057 = vsel %vm295, %v1042, 0
  %v1060 = vsel %vm295, %v1043, 0
  %1062 = vmatpush.msra.mxu0 0.0
  %1063 = vmatpush.msra.mxu0 0.0
  %1064 = vmatpush.msra.mxu0 0.0
  %1065 = vmatpush.msra.mxu0 0.0
  %1066 = vmatpush.msra.mxu0 0.0
  %1067 = vmatpush.msra.mxu0 0.0
  %1068 = vmatpush.msra.mxu0 0.0
  %1069 = vmatpush.msra.mxu0 0.0
  %1070 = vmatpush.msra.mxu0 0.0
  %1071 = vmatpush.msra.mxu0 0.0
  %1072 = vmatpush.msra.mxu0 0.0
  %1073 = vmatpush.msra.mxu0 %v1054
  %1074 = vmatpush.msra.mxu0 %v1038
  %1075 = vmatpush.msra.mxu0 %v1035
  %1076 = vmatpush.msra.mxu0 %v1032
  %1077 = vmatpush.msra.mxu0 %v1029
  %1078 = vmatmul.f32.gmra.mxu0 %v1051
  %v1079 = vpop.f32.mrf.mxu0
  %v1080 = vadd.f32 %v1048, %v1079
  %1081 = vdwg.mxu0
  %1082 = vmatpush.msra.mxu0 0.0
  %1083 = vmatpush.msra.mxu0 0.0
  %1084 = vmatpush.msra.mxu0 0.0
  %1085 = vmatpush.msra.mxu0 0.0
  %1086 = vmatpush.msra.mxu0 0.0
  %1087 = vmatpush.msra.mxu0 0.0
  %1088 = vmatpush.msra.mxu0 0.0
  %1089 = vmatpush.msra.mxu0 0.0
  %1090 = vmatpush.msra.mxu0 0.0
  %1091 = vmatpush.msra.mxu0 0.0
  %1092 = vmatpush.msra.mxu0 0.0
  %1093 = vmatpush.msra.mxu0 %v1057
  %1094 = vmatpush.msra.mxu0 %v1039
  %1095 = vmatpush.msra.mxu0 %v1036
  %1096 = vmatpush.msra.mxu0 %v1033
  %1097 = vmatpush.msra.mxu0 %v1030
  %1098 = vmatmul.f32.gmra.mxu0 %v1051
  %v1099 = vpop.f32.mrf.mxu0
  %v1100 = vadd.f32 %v1048, %v1099
  %1101 = vdwg.mxu0
  %1102 = vmatpush.msra.mxu0 0.0
  %1103 = vmatpush.msra.mxu0 0.0
  %1104 = vmatpush.msra.mxu0 0.0
  %1105 = vmatpush.msra.mxu0 0.0
  %1106 = vmatpush.msra.mxu0 0.0
  %1107 = vmatpush.msra.mxu0 0.0
  %1108 = vmatpush.msra.mxu0 0.0
  %1109 = vmatpush.msra.mxu0 0.0
  %1110 = vmatpush.msra.mxu0 0.0
  %1111 = vmatpush.msra.mxu0 0.0
  %1112 = vmatpush.msra.mxu0 0.0
  %1113 = vmatpush.msra.mxu0 %v1060
  %1114 = vmatpush.msra.mxu0 %v1040
  %1115 = vmatpush.msra.mxu0 %v1037
  %1116 = vmatpush.msra.mxu0 %v1034
  %1117 = vmatpush.msra.mxu0 %v1031
  %1118 = vmatmul.f32.gmra.mxu0 %v1051
  %v1119 = vpop.f32.mrf.mxu0
  %v1120 = vadd.f32 %v1048, %v1119
  %1121 = vdwg.mxu0
  %v1122 = vmul.f32 %v1080, %v366
  %v1123 = vmul.f32 %v1100, %v367
  %v1124 = vmul.f32 %v1120, %v368
  %v1125 = vadd.f32 %v1122, %v1123
  %v1126 = vsel %vm29, %v1124, 0.0
  %v1127 = vadd.f32 %v1125, %v1126
  %1128 = vadd.xlane.f32.xlu0 %v1127
  %v1129 = vpop.xlane.xlu0 %1128
  %v1130 = vmul.f32 %v1129, 0.00390625
  %v1131 = vsub.f32 %v1080, %v1130
  %v1132 = vsub.f32 %v1100, %v1130
  %v1133 = vsub.f32 %v1120, %v1130
  %v1134 = vmul.f32 %v1131, %v366
  %v1135 = vmul.f32 %v1132, %v367
  %v1136 = vmul.f32 %v1133, %v368
  %v1137 = vmul.f32 %v1134, %v1134
  %v1138 = vmul.f32 %v1135, %v1135
  %v1139 = vmul.f32 %v1136, %v1136
  %v1140 = vadd.f32 %v1137, %v1138
  %v1141 = vsel %vm29, %v1139, 0.0
  %v1142 = vadd.f32 %v1140, %v1141
  %1143 = vadd.xlane.f32.xlu0 %v1142
  %v1144 = vpop.xlane.xlu0 %1143
  %v1145 = vmul.f32 %v1144, 0.00390625
  %v1146 = vadd.f32 %v1145, 1e-05
  %v1147 = vrsqrt.pop %v1146
  %v1148 = vmul.f32 %v1147, %v1146
  %v1149 = vmul.f32 %v1148, %v1147
  %v1150 = vmul.f32 0.5, %v1149
  %v1151 = vsub.f32 1.5, %v1150
  %v1152 = vmul.f32 %v1147, %v1151
  %vm1153 = vweird.f32 %v1146
  %vm1154 = vweird.f32 %v1147
  %vm1155 = vmor %vm1153, %vm1154
  %v1156 = vsel %vm1155, %v1147, %v1152
  %v1157 = vmul.f32 %v1131, %v1156
  %v1158 = vmul.f32 %v1132, %v1156
  %v1159 = vmul.f32 %v1133, %v1156
  %v1160 = vmul.f32 %v1157, 0.2
  %v1161 = vmul.f32 %v1158, 0.2
  %v1162 = vmul.f32 %v1159, 0.2
  %v1163 = vmax.f32 %v1157, %v1160
  %v1164 = vmax.f32 %v1158, %v1161
  %v1165 = vmax.f32 %v1159, %v1162
  %v1166 = vmul.f32 %v1163, %v366
  %v1167 = vmul.f32 %v1164, %v367
  %v1168 = vmul.f32 %v1165, %v368
  %1169 = vst [vmem:[#allocation2 + $0x8] sm:$0xff] %v1166
  %1170 = vst [vmem:[#allocation2 + $0x10] sm:$0xff] %v1167
  %1171 = vst.msk [vmem:[#allocation2 + $0x18] sm:$0xff] %vm29, %v1168
  %v1172 = vld [vmem:[#allocation2] sm:$0xff]
  %v1173 = vld [vmem:[#allocation2 + $0x8] sm:$0xff]
  %v1174 = vld [vmem:[#allocation2 + $0x10] sm:$0xff]
  %v1175 = vld [vmem:[#allocation2 + $0x18] sm:$0xff]
  %1180 = vrot.lane.b32.xlu0 %v1172, 19
  %v1181 = vpop.permute.xlu0 %1180
  %1182 = vrot.lane.b32.xlu0 %v1173, 19
  %v1183 = vpop.permute.xlu0 %1182
  %1184 = vrot.lane.b32.xlu0 %v1174, 19
  %v1185 = vpop.permute.xlu0 %1184
  %1186 = vrot.lane.b32.xlu0 %v1175, 19
  %v1187 = vpop.permute.xlu0 %1186
  %v1188 = vsel %vm50, %v1181, %v1183
  %v1189 = vsel %vm50, %v1183, %v1185
  %v1190 = vsel %vm50, %v1185, %v1187
  %1194 = vst [vmem:[#allocation4] sm:$0xff] %v1188
  %1195 = vst [vmem:[#allocation4 + $0x8] sm:$0xff] %v1189
  %1196 = vst.msk [vmem:[#allocation4 + $0x10] sm:$0xff] %vm29, %v1190
  %v1197 = vld [vmem:[#allocation2] sm:$0xff]
  %v1198 = vld [vmem:[#allocation2 + $0x8] sm:$0xff]
  %v1199 = vld [vmem:[#allocation2 + $0x10] sm:$0xff]
  %v1200 = vld [vmem:[#allocation2 + $0x18] sm:$0xff]
  %1205 = vrot.lane.b32.xlu0 %v1197, 18
  %v1206 = vpop.permute.xlu0 %1205
  %1207 = vrot.lane.b32.xlu0 %v1198, 18
  %v1208 = vpop.permute.xlu0 %1207
  %1209 = vrot.lane.b32.xlu0 %v1199, 18
  %v1210 = vpop.permute.xlu0 %1209
  %1211 = vrot.lane.b32.xlu0 %v1200, 18
  %v1212 = vpop.permute.xlu0 %1211
  %v1213 = vsel %vm81, %v1206, %v1208
  %v1214 = vsel %vm81, %v1208, %v1210
  %v1215 = vsel %vm81, %v1210, %v1212
  %1219 = vst [vmem:[#allocation4 + $0x18] sm:$0xff] %v1213
  %1220 = vst [vmem:[#allocation4 + $0x20] sm:$0xff] %v1214
  %1221 = vst.msk [vmem:[#allocation4 + $0x28] sm:$0xff] %vm29, %v1215
  %v1222 = vld [vmem:[#allocation2] sm:$0xff]
  %v1223 = vld [vmem:[#allocation2 + $0x8] sm:$0xff]
  %v1224 = vld [vmem:[#allocation2 + $0x10] sm:$0xff]
  %v1225 = vld [vmem:[#allocation2 + $0x18] sm:$0xff]
  %1230 = vrot.lane.b32.xlu0 %v1222, 17
  %v1231 = vpop.permute.xlu0 %1230
  %1232 = vrot.lane.b32.xlu0 %v1223, 17
  %v1233 = vpop.permute.xlu0 %1232
  %1234 = vrot.lane.b32.xlu0 %v1224, 17
  %v1235 = vpop.permute.xlu0 %1234
  %1236 = vrot.lane.b32.xlu0 %v1225, 17
  %v1237 = vpop.permute.xlu0 %1236
  %v1238 = vsel %vm111, %v1231, %v1233
  %v1239 = vsel %vm111, %v1233, %v1235
  %v1240 = vsel %vm111, %v1235, %v1237
  %1244 = vst [vmem:[#allocation4 + $0x30] sm:$0xff] %v1238
  %1245 = vst [vmem:[#allocation4 + $0x38] sm:$0xff] %v1239
  %1246 = vst.msk [vmem:[#allocation4 + $0x40] sm:$0xff] %vm29, %v1240
  %v1247 = vld [vmem:[#allocation2] sm:$0xff]
  %v1248 = vld [vmem:[#allocation2 + $0x8] sm:$0xff]
  %v1249 = vld [vmem:[#allocation2 + $0x10] sm:$0xff]
  %v1250 = vld [vmem:[#allocation2 + $0x18] sm:$0xff]
  %1255 = vrot.lane.b32.xlu0 %v1247, 1
  %v1256 = vpop.permute.xlu0 %1255
  %1257 = vrot.lane.b32.xlu0 %v1248, 1
  %v1258 = vpop.permute.xlu0 %1257
  %1259 = vrot.lane.b32.xlu0 %v1249, 1
  %v1260 = vpop.permute.xlu0 %1259
  %1261 = vrot.lane.b32.xlu0 %v1250, 1
  %v1262 = vpop.permute.xlu0 %1261
  %v1263 = vsel %vm141, %v1256, %v1258
  %v1264 = vsel %vm141, %v1258, %v1260
  %v1265 = vsel %vm141, %v1260, %v1262
  %1269 = vst [vmem:[#allocation4 + $0x48] sm:$0xff] %v1263
  %1270 = vst [vmem:[#allocation4 + $0x50] sm:$0xff] %v1264
  %1271 = vst.msk [vmem:[#allocation4 + $0x58] sm:$0xff] %vm29, %v1265
  %v1272 = vld [vmem:[#allocation2 + $0x8] sm:$0xff]
  %v1273 = vld [vmem:[#allocation2 + $0x10] sm:$0xff]
  %v1274 = vld [vmem:[#allocation2 + $0x18] sm:$0xff]
  %1275 = vst [vmem:[#allocation4 + $0x60] sm:$0xff] %v1272
  %1276 = vst [vmem:[#allocation4 + $0x68] sm:$0xff] %v1273
  %1277 = vst.msk [vmem:[#allocation4 + $0x70] sm:$0xff] %vm29, %v1274
  %v1278 = vld [vmem:[#allocation2 + $0x8] sm:$0xff]
  %v1279 = vld [vmem:[#allocation2 + $0x10] sm:$0xff]
  %v1280 = vld [vmem:[#allocation2 + $0x18] sm:$0xff]
  %1284 = vrot.lane.b32.xlu0 %v1278, 127
  %v1285 = vpop.permute.xlu0 %1284
  %1286 = vrot.lane.b32.xlu0 %v1279, 127
  %v1287 = vpop.permute.xlu0 %1286
  %1288 = vrot.lane.b32.xlu0 %v1280, 127
  %v1289 = vpop.permute.xlu0 %1288
  %v1290 = vsel %vm184, %v1285, %v1287
  %v1291 = vsel %vm184, %v1287, %v1289
  %1295 = vst [vmem:[#allocation4 + $0x78] sm:$0xff] %v1290
  %1296 = vst [vmem:[#allocation4 + $0x80] sm:$0xff] %v1291
  %1297 = vst.msk [vmem:[#allocation4 + $0x88] sm:$0xff] %vm29, %v1289
  %v1298 = vld [vmem:[#allocation2 + $0x8] sm:$0xff]
  %v1299 = vld [vmem:[#allocation2 + $0x10] sm:$0xff]
  %v1300 = vld [vmem:[#allocation2 + $0x18] sm:$0xff]
  %1304 = vrot.lane.b32.xlu0 %v1298, 111
  %v1305 = vpop.permute.xlu0 %1304
  %1306 = vrot.lane.b32.xlu0 %v1299, 111
  %v1307 = vpop.permute.xlu0 %1306
  %1308 = vrot.lane.b32.xlu0 %v1300, 111
  %v1309 = vpop.permute.xlu0 %1308
  %v1310 = vsel %vm209, %v1305, %v1307
  %v1311 = vsel %vm209, %v1307, %v1309
  %1315 = vst [vmem:[#allocation4 + $0x90] sm:$0xff] %v1310
  %1316 = vst [vmem:[#allocation4 + $0x98] sm:$0xff] %v1311
  %1317 = vst.msk [vmem:[#allocation4 + $0xa0] sm:$0xff] %vm29, %v1309
  %v1318 = vld [vmem:[#allocation2 + $0x8] sm:$0xff]
  %v1319 = vld [vmem:[#allocation2 + $0x10] sm:$0xff]
  %v1320 = vld [vmem:[#allocation2 + $0x18] sm:$0xff]
  %1324 = vrot.lane.b32.xlu0 %v1318, 110
  %v1325 = vpop.permute.xlu0 %1324
  %1326 = vrot.lane.b32.xlu0 %v1319, 110
  %v1327 = vpop.permute.xlu0 %1326
  %1328 = vrot.lane.b32.xlu0 %v1320, 110
  %v1329 = vpop.permute.xlu0 %1328
  %v1330 = vsel %vm235, %v1325, %v1327
  %v1331 = vsel %vm235, %v1327, %v1329
  %1335 = vst [vmem:[#allocation4 + $0xa8] sm:$0xff] %v1330
  %1336 = vst [vmem:[#allocation4 + $0xb0] sm:$0xff] %v1331
  %1337 = vst.msk [vmem:[#allocation4 + $0xb8] sm:$0xff] %vm29, %v1329
  %v1338 = vld [vmem:[#allocation2 + $0x8] sm:$0xff]
  %v1339 = vld [vmem:[#allocation2 + $0x10] sm:$0xff]
  %v1340 = vld [vmem:[#allocation2 + $0x18] sm:$0xff]
  %1344 = vrot.lane.b32.xlu0 %v1338, 109
  %v1345 = vpop.permute.xlu0 %1344
  %1346 = vrot.lane.b32.xlu0 %v1339, 109
  %v1347 = vpop.permute.xlu0 %1346
  %1348 = vrot.lane.b32.xlu0 %v1340, 109
  %v1349 = vpop.permute.xlu0 %1348
  %v1350 = vsel %vm260, %v1345, %v1347
  %v1351 = vsel %vm260, %v1347, %v1349
  %1355 = vst [vmem:[#allocation4 + $0xc0] sm:$0xff] %v1350
  %1356 = vst [vmem:[#allocation4 + $0xc8] sm:$0xff] %v1351
  %1357 = vst.msk [vmem:[#allocation4 + $0xd0] sm:$0xff] %vm29, %v1349
  %v1358 = vld [vmem:[%s3] sm:$0xff]
  %v1359 = vld [vmem:[#allocation4] sm:$0xff]
  %v1360 = vld [vmem:[#allocation4 + $0x8] sm:$0xff]
  %v1361 = vld [vmem:[#allocation4 + $0x10] sm:$0xff]
  %v1362 = vld [vmem:[#allocation4 + $0x18] sm:$0xff]
  %v1363 = vld [vmem:[#allocation4 + $0x20] sm:$0xff]
  %v1364 = vld [vmem:[#allocation4 + $0x28] sm:$0xff]
  %v1365 = vld [vmem:[#allocation4 + $0x30] sm:$0xff]
  %v1366 = vld [vmem:[#allocation4 + $0x38] sm:$0xff]
  %v1367 = vld [vmem:[#allocation4 + $0x40] sm:$0xff]
  %v1368 = vld [vmem:[#allocation4 + $0x48] sm:$0xff]
  %v1369 = vld [vmem:[#allocation4 + $0x50] sm:$0xff]
  %v1370 = vld [vmem:[#allocation4 + $0x58] sm:$0xff]
  %v1371 = vld [vmem:[#allocation4 + $0x60] sm:$0xff]
  %v1372 = vld [vmem:[#allocation4 + $0x68] sm:$0xff]
  %v1373 = vld [vmem:[#allocation4 + $0x70] sm:$0xff]
  %v1374 = vld [vmem:[#allocation4 + $0x78] sm:$0xff]
  %v1375 = vld [vmem:[#allocation4 + $0x80] sm:$0xff]
  %v1376 = vld [vmem:[#allocation4 + $0x88] sm:$0xff]
  %v1377 = vld [vmem:[#allocation4 + $0x90] sm:$0xff]
  %v1378 = vld [vmem:[#allocation4 + $0x98] sm:$0xff]
  %v1379 = vld [vmem:[#allocation4 + $0xa0] sm:$0xff]
  %v1380 = vld [vmem:[#allocation4 + $0xa8] sm:$0xff]
  %v1381 = vld [vmem:[#allocation4 + $0xb0] sm:$0xff]
  %v1382 = vld [vmem:[#allocation4 + $0xb8] sm:$0xff]
  %v1383 = vld [vmem:[#allocation4 + $0xc0] sm:$0xff]
  %v1384 = vld [vmem:[#allocation4 + $0xc8] sm:$0xff]
  %v1385 = vld [vmem:[#allocation4 + $0xd0] sm:$0xff]
  %v1386 = vld [vmem:[%s4] sm:$0xff]
  %1388 = vset.pattern.permute.xlu0 0
  %1389 = vperm.xlu0 %1388, %v1386
  %v1390 = vpop.permute.xlu0 %1389
  %v1393 = vsel %vm642, %v1358, 0
  %1395 = vmatpush.msra.mxu0 0.0
  %1396 = vmatpush.msra.mxu0 0.0
  %1397 = vmatpush.msra.mxu0 0.0
  %1398 = vmatpush.msra.mxu0 0.0
  %1399 = vmatpush.msra.mxu0 0.0
  %1400 = vmatpush.msra.mxu0 0.0
  %1401 = vmatpush.msra.mxu0 0.0
  %1402 = vmatpush.msra.mxu0 %v1383
  %1403 = vmatpush.msra.mxu0 %v1380
  %1404 = vmatpush.msra.mxu0 %v1377
  %1405 = vmatpush.msra.mxu0 %v1374
  %1406 = vmatpush.msra.mxu0 %v1371
  %1407 = vmatpush.msra.mxu0 %v1368
  %1408 = vmatpush.msra.mxu0 %v1365
  %1409 = vmatpush.msra.mxu0 %v1362
  %1410 = vmatpush.msra.mxu0 %v1359
  %1411 = vmatmul.f32.gmra.mxu0 %v1393
  %v1412 = vpop.f32.mrf.mxu0
  %v1413 = vadd.f32 %v1390, %v1412
  %1414 = vdwg.mxu0
  %1415 = vmatpush.msra.mxu0 0.0
  %1416 = vmatpush.msra.mxu0 0.0
  %1417 = vmatpush.msra.mxu0 0.0
  %1418 = vmatpush.msra.mxu0 0.0
  %1419 = vmatpush.msra.mxu0 0.0
  %1420 = vmatpush.msra.mxu0 0.0
  %1421 = vmatpush.msra.mxu0 0.0
  %1422 = vmatpush.msra.mxu0 %v1384
  %1423 = vmatpush.msra.mxu0 %v1381
  %1424 = vmatpush.msra.mxu0 %v1378
  %1425 = vmatpush.msra.mxu0 %v1375
  %1426 = vmatpush.msra.mxu0 %v1372
  %1427 = vmatpush.msra.mxu0 %v1369
  %1428 = vmatpush.msra.mxu0 %v1366
  %1429 = vmatpush.msra.mxu0 %v1363
  %1430 = vmatpush.msra.mxu0 %v1360
  %1431 = vmatmul.f32.gmra.mxu0 %v1393
  %v1432 = vpop.f32.mrf.mxu0
  %v1433 = vadd.f32 %v1390, %v1432
  %1434 = vdwg.mxu0
  %1435 = vmatpush.msra.mxu0 0.0
  %1436 = vmatpush.msra.mxu0 0.0
  %1437 = vmatpush.msra.mxu0 0.0
  %1438 = vmatpush.msra.mxu0 0.0
  %1439 = vmatpush.msra.mxu0 0.0
  %1440 = vmatpush.msra.mxu0 0.0
  %1441 = vmatpush.msra.mxu0 0.0
  %1442 = vmatpush.msra.mxu0 %v1385
  %1443 = vmatpush.msra.mxu0 %v1382
  %1444 = vmatpush.msra.mxu0 %v1379
  %1445 = vmatpush.msra.mxu0 %v1376
  %1446 = vmatpush.msra.mxu0 %v1373
  %1447 = vmatpush.msra.mxu0 %v1370
  %1448 = vmatpush.msra.mxu0 %v1367
  %1449 = vmatpush.msra.mxu0 %v1364
  %1450 = vmatpush.msra.mxu0 %v1361
  %1451 = vmatmul.f32.gmra.mxu0 %v1393
  %v1452 = vpop.f32.mrf.mxu0
  %v1453 = vadd.f32 %v1390, %v1452
  %1454 = vdwg.mxu0
  %v1455 = vmul.f32 %v1413, %v366
  %v1456 = vmul.f32 %v1433, %v367
  %v1457 = vmul.f32 %v1453, %v368
  %v1458 = vadd.f32 %v1455, %v1456
  %v1459 = vsel %vm29, %v1457, 0.0
  %v1460 = vadd.f32 %v1458, %v1459
  %1461 = vadd.xlane.f32.xlu0 %v1460
  %v1462 = vpop.xlane.xlu0 %1461
  %v1463 = vmul.f32 %v1462, 0.00390625
  %v1464 = vsub.f32 %v1413, %v1463
  %v1465 = vsub.f32 %v1433, %v1463
  %v1466 = vsub.f32 %v1453, %v1463
  %v1467 = vmul.f32 %v1464, %v366
  %v1468 = vmul.f32 %v1465, %v367
  %v1469 = vmul.f32 %v1466, %v368
  %v1470 = vmul.f32 %v1467, %v1467
  %v1471 = vmul.f32 %v1468, %v1468
  %v1472 = vmul.f32 %v1469, %v1469
  %v1473 = vadd.f32 %v1470, %v1471
  %v1474 = vsel %vm29, %v1472, 0.0
  %v1475 = vadd.f32 %v1473, %v1474
  %1476 = vadd.xlane.f32.xlu0 %v1475
  %v1477 = vpop.xlane.xlu0 %1476
  %v1478 = vmul.f32 %v1477, 0.00390625
  %v1479 = vadd.f32 %v1478, 1e-05
  %v1480 = vrsqrt.pop %v1479
  %v1481 = vmul.f32 %v1480, %v1479
  %v1482 = vmul.f32 %v1481, %v1480
  %v1483 = vmul.f32 0.5, %v1482
  %v1484 = vsub.f32 1.5, %v1483
  %v1485 = vmul.f32 %v1480, %v1484
  %vm1486 = vweird.f32 %v1479
  %vm1487 = vweird.f32 %v1480
  %vm1488 = vmor %vm1486, %vm1487
  %v1489 = vsel %vm1488, %v1480, %v1485
  %v1490 = vmul.f32 %v1464, %v1489
  %v1491 = vmul.f32 %v1465, %v1489
  %v1492 = vmul.f32 %v1466, %v1489
  %v1493 = vmul.f32 %v1490, 0.2
  %v1494 = vmul.f32 %v1491, 0.2
  %v1495 = vmul.f32 %v1492, 0.2
  %v1496 = vmax.f32 %v1490, %v1493
  %v1497 = vmax.f32 %v1491, %v1494
  %v1498 = vmax.f32 %v1492, %v1495
  %s1499 = scalar_lea.vmem %s6, 24
  %1500 = vst [vmem:[%s1499] sm:$0xff] %v1496
  %1501 = vst [vmem:[%s1499 + $0x8] sm:$0xff] %v1497
  %1502 = vst.msk [vmem:[%s1499 + $0x10] sm:$0xff] %vm29, %v1498
  %1503 = vst [vmem:[#allocation2 + $0x8] sm:$0xff] %v1496
  %1504 = vst [vmem:[#allocation2 + $0x10] sm:$0xff] %v1497
  %1505 = vst.msk [vmem:[#allocation2 + $0x18] sm:$0xff] %vm29, %v1498
  %v1506 = vld [vmem:[#allocation2 + $0x8] sm:$0xff]
  %v1507 = vld [vmem:[#allocation2 + $0x10] sm:$0xff]
  %v1508 = vld [vmem:[#allocation2 + $0x18] sm:$0xff]
  %1512 = vrot.lane.b32.xlu0 %v1506, 127
  %v1513 = vpop.permute.xlu0 %1512
  %1514 = vrot.lane.b32.xlu0 %v1507, 127
  %v1515 = vpop.permute.xlu0 %1514
  %1516 = vrot.lane.b32.xlu0 %v1508, 127
  %v1517 = vpop.permute.xlu0 %1516
  %v1518 = vsel %vm184, %v1513, %v1515
  %v1519 = vsel %vm184, %v1515, %v1517
  %v1523 = vmax.f32 %v1496, %v1518
  %v1524 = vmax.f32 %v1497, %v1519
  %v1525 = vmax.f32 %v1498, %v1517
  %v1526 = vmax.f32 %v1506, %v1518
  %v1527 = vmax.f32 %v1507, %v1519
  %v1528 = vmax.f32 %v1508, %v1517
  %1532 = vrot.lane.b32.xlu0 %v1526, 110
  %v1533 = vpop.permute.xlu0 %1532
  %1534 = vrot.lane.b32.xlu0 %v1527, 110
  %v1535 = vpop.permute.xlu0 %1534
  %1536 = vrot.lane.b32.xlu0 %v1528, 110
  %v1537 = vpop.permute.xlu0 %1536
  %v1538 = vsel %vm235, %v1533, %v1535
  %v1539 = vsel %vm235, %v1535, %v1537
  %v1543 = vmax.f32 %v1523, %v1538
  %v1544 = vmax.f32 %v1524, %v1539
  %v1545 = vmax.f32 %v1525, %v1537
  %s1546 = scalar_lea.vmem %s7, 24
  %1547 = vst [vmem:[%s1546] sm:$0xff] %v1543
  %1548 = vst [vmem:[%s1546 + $0x8] sm:$0xff] %v1544
  %1549 = vst.msk [vmem:[%s1546 + $0x10] sm:$0xff] %vm29, %v1545
  // Predicated region
  $region26: #{downconv_pallas.1} parent=0 // pred_check
    _
  $region27: #{downconv_pallas.1} parent=0 // pred_check_branch
    %1551 = sbr.rel (0) target = $region29
  $region28: #{downconv_pallas.1} parent=0 // pred_region
    _
  $region29: #{downconv_pallas.1} parent=0 // pred_fallthru
    _
  // Predicated region
  $region30: #{downconv_pallas.1} parent=0 // pred_check
    _
  $region31: #{downconv_pallas.1} parent=0 // pred_check_branch
    %1553 = sbr.rel (0) target = $region33
  $region32: #{downconv_pallas.1} parent=0 // pred_region
    _
  $region33: #{downconv_pallas.1} parent=0 // pred_fallthru
    _
  // Predicated region
  $region34: #{downconv_pallas.1} parent=0 // pred_check
    _
  $region35: #{downconv_pallas.1} parent=0 // pred_check_branch
    %1555 = sbr.rel (0) target = $region37
  $region36: #{downconv_pallas.1} parent=0 // pred_region
    _
  $region37: #{downconv_pallas.1} parent=0 // pred_fallthru
    _
  // Predicated region
  $region38: #{downconv_pallas.1} parent=0 // pred_check
    _
  $region39: #{downconv_pallas.1} parent=0 // pred_check_branch
    %1557 = sbr.rel (0) target = $region41
  $region40: #{downconv_pallas.1} parent=0 // pred_region
    _
  $region41: #{downconv_pallas.1} parent=0 // pred_fallthru
    _

</llo_original>
